<compile_context>
chip_gen: v7x
topology: tpu7x:2x2x1
jax: 0.10.0
libtpu: 0.0.40
codegen_flags: <defaults>
</compile_context>

<pallas_src>
import functools

import jax
import jax.numpy as jnp
from jax import lax
from jax.experimental import pallas as pl
from jax.experimental.pallas import tpu as pltpu


def _round_up(x, m):
    return ((x + m - 1) // m) * m


_NEG_LARGE = -1e30  # exp(_NEG_LARGE * inv_eps) underflows to exactly 0.0 in f32


def _matching_kernel(q_ref, rT_ref, z_ref, k_ref, *,
                     m_aug, n_aug, sinkhorn_iterations, inv_eps, unroll):
    """One (query, reference) pair on a lane/sublane-padded slab, all in VMEM.

    q_ref : (Mp, D)  f32 -- query descriptors, rows >= M are zero padding
    rT_ref: (D, Np)  f32 -- reference descriptors, pre-transposed in the wrapper
                            (cols >= N are zero padding)
    z_ref : (1, 1)   f32 -- SMEM scalar: SuperGlue bin score
    k_ref : (Mp, Np) f32 -- output; the real result lives in [:m_aug, :n_aug]
    """
    q = q_ref[...]
    rT = rT_ref[...]
    z = z_ref[0, 0]

    # Score matmul on the MXU.  HIGHEST keeps f32 semantics: the error would
    # otherwise be amplified by exp(S / eps).
    score = jnp.dot(q, rT, preferred_element_type=jnp.float32,
                    precision=lax.Precision.HIGHEST)                 # (Mp, Np)

    mp, np_ = score.shape
    row_idx = lax.broadcasted_iota(jnp.int32, (mp, np_), 0)
    col_idx = lax.broadcasted_iota(jnp.int32, (mp, np_), 1)
    valid = (row_idx < m_aug) & (col_idx < n_aug)
    border = (row_idx == m_aug - 1) | (col_idx == n_aug - 1)

    # Single fused select: bin score on the augmented border, huge-negative on
    # the lane/sublane padding so exp() pins padded entries to exactly 0 (they
    # then contribute nothing to any Sinkhorn sum -> padded recurrence is
    # bit-equivalent to the unpadded one on the real (M+1, N+1) block).
    s_masked = jnp.where(valid, jnp.where(border, z, score), _NEG_LARGE)
    k0 = jnp.exp(s_masked * inv_eps)                                 # (Mp, Np)

    row_valid = lax.broadcasted_iota(jnp.int32, (mp, 1), 0) < m_aug    # (Mp, 1)
    col_valid = lax.broadcasted_iota(jnp.int32, (1, np_), 1) < n_aug   # (1, Np)

    def masked_recip(s, mask):
        # EUP approx reciprocal + one Newton step (rel. err ~1e-8, negligible
        # even compounded over 2 * sinkhorn_iterations normalizations).
        s_safe = jnp.where(mask, s, 1.0)
        r = pl.reciprocal(s_safe, approx=True)
        r = r * (2.0 - s_safe * r)
        return jnp.where(mask, r, 0.0)

    # Scaling-vector Sinkhorn:
    #   u <- 1 / (K v)      (== row normalization)
    #   v <- 1 / (K^T u)    (== column normalization)
    # K stays fixed and read-only; only the tiny u/v vectors are loop carries,
    # so no full-slab store happens inside the loop.
    def body(_, carry):
        u, v = carry
        kv = jnp.sum(k0 * v, axis=1, keepdims=True)   # VALU mul + XLU lane reduce
        u = masked_recip(kv, row_valid)                # (Mp, 1)
        ku = jnp.sum(k0 * u, axis=0, keepdims=True)   # VALU mul + XLU sublane reduce
        v = masked_recip(ku, col_valid)                # (1, Np)
        return u, v
    # TODO(synk): for large Mp/Np, benchmark MXU matvecs (lax.dot_general) for
    # kv/ku against these VALU+XLU reduces; the crossover is generation-specific.

    u0 = jnp.zeros((mp, 1), jnp.float32)   # overwritten on the first iteration
    v0 = jnp.ones((1, np_), jnp.float32)
    u, v = lax.fori_loop(0, sinkhorn_iterations, body, (u0, v0), unroll=unroll)

    # Materialize P_augmented = diag(u) K diag(v) exactly once.
    # Padded rows/cols stay exactly 0 (k0, u, v all masked there).
    k_ref[...] = k0 * u * v


def _vmem_limit_bytes(mp, np_, d):
    """Generation-aware scoped-VMEM request with headroom (no silent clamping)."""
    try:
        cap = int(pltpu.get_tpu_info().vmem_capacity_bytes)  # 64 MiB v7x, 128 MiB v5e/v6e
    except Exception:
        cap = 64 * 1024 * 1024
    budget = max(cap - 16 * 1024 * 1024, 32 * 1024 * 1024)   # compiler scratch + DMA headroom
    f32 = 4
    blocks = 2 * f32 * (mp * d + d * np_ + mp * np_)         # double-buffered pipeline blocks
    working = f32 * (6 * mp * np_ + 8 * (mp + np_))          # score/K/mask temporaries + u,v
    need = blocks + working + (2 << 20)
    if need > budget:
        # TODO(synk): tile the Np axis with an inner grid instead of failing.
        raise ValueError(
            f"Sinkhorn slab needs ~{need >> 20} MiB VMEM, budget {budget >> 20} MiB")
    return int(min(max(need, 16 * 1024 * 1024), budget))


def object_matching_forward_batched(d_M_q, d_N_r_stack, z_value,
                                    sinkhorn_iterations=30, sinkhorn_epsilon=0.1):
    """Batched Pallas forward: one query set vs a stack of reference sets.

    d_M_q:       (M, D)
    d_N_r_stack: (B, N, D)   (the module's d_N_r_list, padded to a common N)
    Returns (P, P_augmented_full) with shapes (B, M, N) and (B, M+1, N+1).
    """
    M, D = d_M_q.shape
    B, N, _ = d_N_r_stack.shape
    if M == 0 or N == 0 or B == 0:
        return (jnp.empty((B, M, N), jnp.float32),
                jnp.empty((B, M + 1, N + 1), jnp.float32))

    mp = _round_up(M + 1, 8)       # sublane-aligned rows
    np_ = _round_up(N + 1, 128)    # lane-dense columns

    q_pad = jnp.zeros((mp, D), jnp.float32).at[:M].set(d_M_q.astype(jnp.float32))
    # Pre-transposed references: the (N,D)->(D,N) transpose happens once at
    # trace time, outside the kernel -> no in-kernel relayout before the MXU.
    rT_pad = (jnp.zeros((B, D, np_), jnp.float32)
              .at[:, :, :N].set(jnp.swapaxes(d_N_r_stack.astype(jnp.float32), 1, 2)))
    z_arr = jnp.asarray(z_value, jnp.float32).reshape(1, 1)

    # Fully unroll only when the slab fits in a handful of vregs; otherwise a
    # small partial unroll keeps LLO visibility without the code-size cliff.
    unroll = True if mp * np_ <= 8 * 1024 else 3

    kernel = functools.partial(
        _matching_kernel,
        m_aug=M + 1, n_aug=N + 1,
        sinkhorn_iterations=int(sinkhorn_iterations),
        inv_eps=float(1.0 / sinkhorn_epsilon),
        unroll=unroll)

    k_padded = pl.pallas_call(
        kernel,
        out_shape=jax.ShapeDtypeStruct((B, mp, np_), jnp.float32),
        grid=(B,),
        in_specs=[
            pl.BlockSpec((mp, D), lambda b: (0, 0)),              # shared query block
            pl.BlockSpec((None, D, np_), lambda b: (b, 0, 0)),    # per-pair reference
            pl.BlockSpec((1, 1), lambda b: (0, 0),
                         memory_space=pltpu.MemorySpace.SMEM),    # bin-score scalar
        ],
        out_specs=pl.BlockSpec((None, mp, np_), lambda b: (b, 0, 0)),
        compiler_params=pltpu.CompilerParams(
            dimension_semantics=("parallel",),    # shards pairs across TCs (v7x ~2x)
            vmem_limit_bytes=_vmem_limit_bytes(mp, np_, D)),
    )(q_pad, rT_pad, z_arr)

    p_aug = k_padded[:, :M + 1, :N + 1]
    return p_aug[:, :M, :N], p_aug


def object_matching_forward(d_M_q, d_N_r, z_value,
                            sinkhorn_iterations=30, sinkhorn_epsilon=0.1):
    """Pallas equivalent of ObjectMatchingModule.forward (single pair)."""
    M = d_M_q.shape[0]
    N = d_N_r.shape[0]
    if M == 0 or N == 0:
        return (jnp.empty((M, N), jnp.float32),
                jnp.empty((M + 1, N + 1), jnp.float32))
    P, P_aug = object_matching_forward_batched(
        d_M_q, d_N_r[None], z_value, sinkhorn_iterations, sinkhorn_epsilon)
    return P[0], P_aug[0]


def _reference_forward(d_M_q, d_N_r, z_value, sinkhorn_iterations=30, sinkhorn_epsilon=0.1):
    """Pure-JAX mirror of the PyTorch module (exact-f32 matmul, element-wise Sinkhorn)."""
    M, N = d_M_q.shape[0], d_N_r.shape[0]
    score = jnp.dot(d_M_q, d_N_r.T, precision=lax.Precision.HIGHEST)
    s_aug = jnp.zeros((M + 1, N + 1), jnp.float32)
    s_aug = s_aug.at[:M, :N].set(score)
    s_aug = s_aug.at[:M, N].set(z_value)
    s_aug = s_aug.at[M, :N].set(z_value)
    s_aug = s_aug.at[M, N].set(z_value)
    k = jnp.exp(s_aug / sinkhorn_epsilon)
    for _ in range(sinkhorn_iterations):
        k = k / k.sum(axis=1, keepdims=True)
        k = k / k.sum(axis=0, keepdims=True)
    return k[:M, :N], k


if __name__ == "__main__":
    key = jax.random.PRNGKey(0)
    kq, kr = jax.random.split(key)

    M, N, D, B = 6, 5, 32, 2          # B reference sets (the module's d_N_r_list)
    d_M_q = jax.random.normal(kq, (M, D), dtype=jnp.float32)
    d_N_r_stack = jax.random.normal(kr, (B, N, D), dtype=jnp.float32)
    # SuperGlue descriptors are L2-normalized; this also keeps exp(S/eps) with
    # eps=0.1 comfortably inside float32 range.
    d_M_q = d_M_q / jnp.linalg.norm(d_M_q, axis=-1, keepdims=True)
    d_N_r_stack = d_N_r_stack / jnp.linalg.norm(d_N_r_stack, axis=-1, keepdims=True)

    # Deterministic parameter init (no checkpoint): bin_score z = 0.5 (module default).
    z_value = 0.5
    sinkhorn_iterations = 30
    sinkhorn_epsilon = 0.1

    # Batched path: one query against a stack of references, parallel grid axis.
    P_b, P_aug_b = object_matching_forward_batched(
        d_M_q, d_N_r_stack, z_value, sinkhorn_iterations, sinkhorn_epsilon)
    P_b = jax.block_until_ready(P_b)
    P_aug_b = jax.block_until_ready(P_aug_b)
    assert P_b.shape == (B, M, N) and P_aug_b.shape == (B, M + 1, N + 1)

    for b in range(B):
        P_ref, P_aug_ref = _reference_forward(
            d_M_q, d_N_r_stack[b], z_value, sinkhorn_iterations, sinkhorn_epsilon)
        assert bool(jnp.all(jnp.isfinite(P_aug_b[b])))
        assert jnp.allclose(P_aug_b[b], P_aug_ref, atol=1e-5, rtol=1e-4)
        assert jnp.allclose(P_b[b], P_ref, atol=1e-5, rtol=1e-4)

    # Single-pair entry point (forward semantics of the original module).
    P, P_aug = object_matching_forward(d_M_q, d_N_r_stack[0], z_value,
                                       sinkhorn_iterations, sinkhorn_epsilon)
    P = jax.block_until_ready(P)
    P_aug = jax.block_until_ready(P_aug)
    assert P.shape == (M, N) and P_aug.shape == (M + 1, N + 1)
    assert jnp.allclose(P_aug, P_aug_b[0], atol=1e-6, rtol=1e-6)

    print("KERNEL_OK")
</pallas_src>

<mosaic_0001>
module attributes {stable_mosaic.version = 11 : i64} {
  func.func @_matching_kernel(%arg0: i32, %arg1: memref<8x32xf32, #tpu.memory_space<vmem>>, %arg2: memref<1x32x128xf32, #tpu.memory_space<vmem>>, %arg3: memref<1x1xf32, #tpu.memory_space<smem>>, %arg4: memref<1x8x128xf32, #tpu.memory_space<vmem>>) attributes {dimension_semantics = [#tpu.dimension_semantics<parallel>], iteration_bounds = array<i64: 2>, scalar_prefetch = 0 : i64, scratch_operands = 0 : i64, tpu.core_type = #tpu.core_type<tc>, window_params = [{pipeline_mode = #tpu.pipeline_mode<synchronous>, transform_indices = @transform_0, window_bounds = array<i64: 8, 32>}, {transform_indices = @transform_1, window_bounds = array<i64: 1, 32, 128>}, {transform_indices = @transform_2, window_bounds = array<i64: 1, 1>}, {transform_indices = @transform_3, window_bounds = array<i64: 1, 8, 128>}]} {
    %c0 = arith.constant 0 : index
    %c0_0 = arith.constant 0 : index
    %0 = vector.load %arg1[%c0, %c0_0] : memref<8x32xf32, #tpu.memory_space<vmem>>, vector<8x32xf32>
    %c0_1 = arith.constant 0 : index
    %c0_2 = arith.constant 0 : index
    %c0_3 = arith.constant 0 : index
    %1 = vector.load %arg2[%c0_1, %c0_2, %c0_3] : memref<1x32x128xf32, #tpu.memory_space<vmem>>, vector<1x32x128xf32>
    %2 = vector.shape_cast %1 : vector<1x32x128xf32> to vector<32x128xf32>
    %c0_4 = arith.constant 0 : index
    %c0_5 = arith.constant 0 : index
    %3 = memref.load %arg3[%c0_4, %c0_5] : memref<1x1xf32, #tpu.memory_space<smem>>
    %cst = arith.constant dense<0.000000e+00> : vector<8x128xf32>
    %4 = tpu.matmul %0, %2, %cst {dimension_numbers = #tpu.dot_dimension_numbers<[1], [0], [0], [1], [0, 0, 1, 1], [], []>, precision = #tpu.contract_precision<fp32>} : vector<8x32xf32>, vector<32x128xf32>, vector<8x128xf32> -> vector<8x128xf32>
    %5 = tpu.iota {dimensions = array<i32: 0>} : vector<8x128xi32>
    %6 = tpu.iota {dimensions = array<i32: 1>} : vector<8x128xi32>
    %c7_i32 = arith.constant 7 : i32
    %7 = vector.broadcast %c7_i32 : i32 to vector<8x128xi32>
    %8 = arith.cmpi slt, %5, %7 : vector<8x128xi32>
    %c6_i32 = arith.constant 6 : i32
    %9 = vector.broadcast %c6_i32 : i32 to vector<8x128xi32>
    %10 = arith.cmpi slt, %6, %9 : vector<8x128xi32>
    %11 = arith.andi %8, %10 : vector<8x128xi1>
    %c6_i32_6 = arith.constant 6 : i32
    %12 = vector.broadcast %c6_i32_6 : i32 to vector<8x128xi32>
    %13 = arith.cmpi eq, %5, %12 : vector<8x128xi32>
    %c5_i32 = arith.constant 5 : i32
    %14 = vector.broadcast %c5_i32 : i32 to vector<8x128xi32>
    %15 = arith.cmpi eq, %6, %14 : vector<8x128xi32>
    %16 = arith.ori %13, %15 : vector<8x128xi1>
    %17 = vector.broadcast %3 : f32 to vector<8x128xf32>
    %18 = arith.select %16, %17, %4 : vector<8x128xi1>, vector<8x128xf32>
    %cst_7 = arith.constant -1.000000e+30 : f32
    %19 = vector.broadcast %cst_7 : f32 to vector<8x128xf32>
    %20 = arith.select %11, %18, %19 : vector<8x128xi1>, vector<8x128xf32>
    %cst_8 = arith.constant 1.000000e+01 : f32
    %21 = vector.broadcast %cst_8 : f32 to vector<8x128xf32>
    %22 = arith.mulf %20, %21 : vector<8x128xf32>
    %23 = math.exp %22 : vector<8x128xf32>
    %24 = tpu.iota {dimensions = array<i32: 0>} : vector<8x1xi32>
    %c7_i32_9 = arith.constant 7 : i32
    %25 = vector.broadcast %c7_i32_9 : i32 to vector<8x1xi32>
    %26 = arith.cmpi slt, %24, %25 : vector<8x1xi32>
    %27 = tpu.iota {dimensions = array<i32: 1>} : vector<1x128xi32>
    %c6_i32_10 = arith.constant 6 : i32
    %28 = vector.broadcast %c6_i32_10 : i32 to vector<1x128xi32>
    %29 = arith.cmpi slt, %27, %28 : vector<1x128xi32>
    %cst_11 = arith.constant 0.000000e+00 : f32
    %30 = vector.broadcast %cst_11 : f32 to vector<8x1xf32>
    %cst_12 = arith.constant 1.000000e+00 : f32
    %31 = vector.broadcast %cst_12 : f32 to vector<1x128xf32>
    %c0_i32 = arith.constant 0 : i32
    %32 = vector.broadcast %31 : vector<1x128xf32> to vector<8x128xf32>
    %33 = arith.mulf %23, %32 : vector<8x128xf32>
    %cst_13 = arith.constant dense<0.000000e+00> : vector<8xf32>
    %34 = vector.multi_reduction <add>, %33, %cst_13 [1] : vector<8x128xf32> to vector<8xf32>
    %35 = vector.shape_cast %34 : vector<8xf32> to vector<8x1xf32>
    %cst_14 = arith.constant 1.000000e+00 : f32
    %36 = vector.broadcast %cst_14 : f32 to vector<8x1xf32>
    %37 = arith.select %26, %35, %36 : vector<8x1xi1>, vector<8x1xf32>
    %38 = tpu.reciprocal %37 {approx = true} : vector<8x1xf32> -> vector<8x1xf32>
    %39 = arith.mulf %37, %38 : vector<8x1xf32>
    %cst_15 = arith.constant 2.000000e+00 : f32
    %40 = vector.broadcast %cst_15 : f32 to vector<8x1xf32>
    %41 = arith.subf %40, %39 : vector<8x1xf32>
    %42 = arith.mulf %38, %41 : vector<8x1xf32>
    %cst_16 = arith.constant 0.000000e+00 : f32
    %43 = vector.broadcast %cst_16 : f32 to vector<8x1xf32>
    %44 = arith.select %26, %42, %43 : vector<8x1xi1>, vector<8x1xf32>
    %45 = vector.broadcast %44 : vector<8x1xf32> to vector<8x128xf32>
    %46 = arith.mulf %23, %45 : vector<8x128xf32>
    %cst_17 = arith.constant dense<0.000000e+00> : vector<128xf32>
    %47 = vector.multi_reduction <add>, %46, %cst_17 [0] : vector<8x128xf32> to vector<128xf32>
    %48 = vector.shape_cast %47 : vector<128xf32> to vector<1x128xf32>
    %cst_18 = arith.constant 1.000000e+00 : f32
    %49 = vector.broadcast %cst_18 : f32 to vector<1x128xf32>
    %50 = arith.select %29, %48, %49 : vector<1x128xi1>, vector<1x128xf32>
    %51 = tpu.reciprocal %50 {approx = true} : vector<1x128xf32> -> vector<1x128xf32>
    %52 = arith.mulf %50, %51 : vector<1x128xf32>
    %cst_19 = arith.constant 2.000000e+00 : f32
    %53 = vector.broadcast %cst_19 : f32 to vector<1x128xf32>
    %54 = arith.subf %53, %52 : vector<1x128xf32>
    %55 = arith.mulf %51, %54 : vector<1x128xf32>
    %cst_20 = arith.constant 0.000000e+00 : f32
    %56 = vector.broadcast %cst_20 : f32 to vector<1x128xf32>
    %57 = arith.select %29, %55, %56 : vector<1x128xi1>, vector<1x128xf32>
    %c1_i32 = arith.constant 1 : i32
    %58 = vector.broadcast %57 : vector<1x128xf32> to vector<8x128xf32>
    %59 = arith.mulf %23, %58 : vector<8x128xf32>
    %cst_21 = arith.constant dense<0.000000e+00> : vector<8xf32>
    %60 = vector.multi_reduction <add>, %59, %cst_21 [1] : vector<8x128xf32> to vector<8xf32>
    %61 = vector.shape_cast %60 : vector<8xf32> to vector<8x1xf32>
    %cst_22 = arith.constant 1.000000e+00 : f32
    %62 = vector.broadcast %cst_22 : f32 to vector<8x1xf32>
    %63 = arith.select %26, %61, %62 : vector<8x1xi1>, vector<8x1xf32>
    %64 = tpu.reciprocal %63 {approx = true} : vector<8x1xf32> -> vector<8x1xf32>
    %65 = arith.mulf %63, %64 : vector<8x1xf32>
    %cst_23 = arith.constant 2.000000e+00 : f32
    %66 = vector.broadcast %cst_23 : f32 to vector<8x1xf32>
    %67 = arith.subf %66, %65 : vector<8x1xf32>
    %68 = arith.mulf %64, %67 : vector<8x1xf32>
    %cst_24 = arith.constant 0.000000e+00 : f32
    %69 = vector.broadcast %cst_24 : f32 to vector<8x1xf32>
    %70 = arith.select %26, %68, %69 : vector<8x1xi1>, vector<8x1xf32>
    %71 = vector.broadcast %70 : vector<8x1xf32> to vector<8x128xf32>
    %72 = arith.mulf %23, %71 : vector<8x128xf32>
    %cst_25 = arith.constant dense<0.000000e+00> : vector<128xf32>
    %73 = vector.multi_reduction <add>, %72, %cst_25 [0] : vector<8x128xf32> to vector<128xf32>
    %74 = vector.shape_cast %73 : vector<128xf32> to vector<1x128xf32>
    %cst_26 = arith.constant 1.000000e+00 : f32
    %75 = vector.broadcast %cst_26 : f32 to vector<1x128xf32>
    %76 = arith.select %29, %74, %75 : vector<1x128xi1>, vector<1x128xf32>
    %77 = tpu.reciprocal %76 {approx = true} : vector<1x128xf32> -> vector<1x128xf32>
    %78 = arith.mulf %76, %77 : vector<1x128xf32>
    %cst_27 = arith.constant 2.000000e+00 : f32
    %79 = vector.broadcast %cst_27 : f32 to vector<1x128xf32>
    %80 = arith.subf %79, %78 : vector<1x128xf32>
    %81 = arith.mulf %77, %80 : vector<1x128xf32>
    %cst_28 = arith.constant 0.000000e+00 : f32
    %82 = vector.broadcast %cst_28 : f32 to vector<1x128xf32>
    %83 = arith.select %29, %81, %82 : vector<1x128xi1>, vector<1x128xf32>
    %c2_i32 = arith.constant 2 : i32
    %84 = vector.broadcast %83 : vector<1x128xf32> to vector<8x128xf32>
    %85 = arith.mulf %23, %84 : vector<8x128xf32>
    %cst_29 = arith.constant dense<0.000000e+00> : vector<8xf32>
    %86 = vector.multi_reduction <add>, %85, %cst_29 [1] : vector<8x128xf32> to vector<8xf32>
    %87 = vector.shape_cast %86 : vector<8xf32> to vector<8x1xf32>
    %cst_30 = arith.constant 1.000000e+00 : f32
    %88 = vector.broadcast %cst_30 : f32 to vector<8x1xf32>
    %89 = arith.select %26, %87, %88 : vector<8x1xi1>, vector<8x1xf32>
    %90 = tpu.reciprocal %89 {approx = true} : vector<8x1xf32> -> vector<8x1xf32>
    %91 = arith.mulf %89, %90 : vector<8x1xf32>
    %cst_31 = arith.constant 2.000000e+00 : f32
    %92 = vector.broadcast %cst_31 : f32 to vector<8x1xf32>
    %93 = arith.subf %92, %91 : vector<8x1xf32>
    %94 = arith.mulf %90, %93 : vector<8x1xf32>
    %cst_32 = arith.constant 0.000000e+00 : f32
    %95 = vector.broadcast %cst_32 : f32 to vector<8x1xf32>
    %96 = arith.select %26, %94, %95 : vector<8x1xi1>, vector<8x1xf32>
    %97 = vector.broadcast %96 : vector<8x1xf32> to vector<8x128xf32>
    %98 = arith.mulf %23, %97 : vector<8x128xf32>
    %cst_33 = arith.constant dense<0.000000e+00> : vector<128xf32>
    %99 = vector.multi_reduction <add>, %98, %cst_33 [0] : vector<8x128xf32> to vector<128xf32>
    %100 = vector.shape_cast %99 : vector<128xf32> to vector<1x128xf32>
    %cst_34 = arith.constant 1.000000e+00 : f32
    %101 = vector.broadcast %cst_34 : f32 to vector<1x128xf32>
    %102 = arith.select %29, %100, %101 : vector<1x128xi1>, vector<1x128xf32>
    %103 = tpu.reciprocal %102 {approx = true} : vector<1x128xf32> -> vector<1x128xf32>
    %104 = arith.mulf %102, %103 : vector<1x128xf32>
    %cst_35 = arith.constant 2.000000e+00 : f32
    %105 = vector.broadcast %cst_35 : f32 to vector<1x128xf32>
    %106 = arith.subf %105, %104 : vector<1x128xf32>
    %107 = arith.mulf %103, %106 : vector<1x128xf32>
    %cst_36 = arith.constant 0.000000e+00 : f32
    %108 = vector.broadcast %cst_36 : f32 to vector<1x128xf32>
    %109 = arith.select %29, %107, %108 : vector<1x128xi1>, vector<1x128xf32>
    %c3_i32 = arith.constant 3 : i32
    %110 = vector.broadcast %109 : vector<1x128xf32> to vector<8x128xf32>
    %111 = arith.mulf %23, %110 : vector<8x128xf32>
    %cst_37 = arith.constant dense<0.000000e+00> : vector<8xf32>
    %112 = vector.multi_reduction <add>, %111, %cst_37 [1] : vector<8x128xf32> to vector<8xf32>
    %113 = vector.shape_cast %112 : vector<8xf32> to vector<8x1xf32>
    %cst_38 = arith.constant 1.000000e+00 : f32
    %114 = vector.broadcast %cst_38 : f32 to vector<8x1xf32>
    %115 = arith.select %26, %113, %114 : vector<8x1xi1>, vector<8x1xf32>
    %116 = tpu.reciprocal %115 {approx = true} : vector<8x1xf32> -> vector<8x1xf32>
    %117 = arith.mulf %115, %116 : vector<8x1xf32>
    %cst_39 = arith.constant 2.000000e+00 : f32
    %118 = vector.broadcast %cst_39 : f32 to vector<8x1xf32>
    %119 = arith.subf %118, %117 : vector<8x1xf32>
    %120 = arith.mulf %116, %119 : vector<8x1xf32>
    %cst_40 = arith.constant 0.000000e+00 : f32
    %121 = vector.broadcast %cst_40 : f32 to vector<8x1xf32>
    %122 = arith.select %26, %120, %121 : vector<8x1xi1>, vector<8x1xf32>
    %123 = vector.broadcast %122 : vector<8x1xf32> to vector<8x128xf32>
    %124 = arith.mulf %23, %123 : vector<8x128xf32>
    %cst_41 = arith.constant dense<0.000000e+00> : vector<128xf32>
    %125 = vector.multi_reduction <add>, %124, %cst_41 [0] : vector<8x128xf32> to vector<128xf32>
    %126 = vector.shape_cast %125 : vector<128xf32> to vector<1x128xf32>
    %cst_42 = arith.constant 1.000000e+00 : f32
    %127 = vector.broadcast %cst_42 : f32 to vector<1x128xf32>
    %128 = arith.select %29, %126, %127 : vector<1x128xi1>, vector<1x128xf32>
    %129 = tpu.reciprocal %128 {approx = true} : vector<1x128xf32> -> vector<1x128xf32>
    %130 = arith.mulf %128, %129 : vector<1x128xf32>
    %cst_43 = arith.constant 2.000000e+00 : f32
    %131 = vector.broadcast %cst_43 : f32 to vector<1x128xf32>
    %132 = arith.subf %131, %130 : vector<1x128xf32>
    %133 = arith.mulf %129, %132 : vector<1x128xf32>
    %cst_44 = arith.constant 0.000000e+00 : f32
    %134 = vector.broadcast %cst_44 : f32 to vector<1x128xf32>
    %135 = arith.select %29, %133, %134 : vector<1x128xi1>, vector<1x128xf32>
    %c4_i32 = arith.constant 4 : i32
    %136 = vector.broadcast %135 : vector<1x128xf32> to vector<8x128xf32>
    %137 = arith.mulf %23, %136 : vector<8x128xf32>
    %cst_45 = arith.constant dense<0.000000e+00> : vector<8xf32>
    %138 = vector.multi_reduction <add>, %137, %cst_45 [1] : vector<8x128xf32> to vector<8xf32>
    %139 = vector.shape_cast %138 : vector<8xf32> to vector<8x1xf32>
    %cst_46 = arith.constant 1.000000e+00 : f32
    %140 = vector.broadcast %cst_46 : f32 to vector<8x1xf32>
    %141 = arith.select %26, %139, %140 : vector<8x1xi1>, vector<8x1xf32>
    %142 = tpu.reciprocal %141 {approx = true} : vector<8x1xf32> -> vector<8x1xf32>
    %143 = arith.mulf %141, %142 : vector<8x1xf32>
    %cst_47 = arith.constant 2.000000e+00 : f32
    %144 = vector.broadcast %cst_47 : f32 to vector<8x1xf32>
    %145 = arith.subf %144, %143 : vector<8x1xf32>
    %146 = arith.mulf %142, %145 : vector<8x1xf32>
    %cst_48 = arith.constant 0.000000e+00 : f32
    %147 = vector.broadcast %cst_48 : f32 to vector<8x1xf32>
    %148 = arith.select %26, %146, %147 : vector<8x1xi1>, vector<8x1xf32>
    %149 = vector.broadcast %148 : vector<8x1xf32> to vector<8x128xf32>
    %150 = arith.mulf %23, %149 : vector<8x128xf32>
    %cst_49 = arith.constant dense<0.000000e+00> : vector<128xf32>
    %151 = vector.multi_reduction <add>, %150, %cst_49 [0] : vector<8x128xf32> to vector<128xf32>
    %152 = vector.shape_cast %151 : vector<128xf32> to vector<1x128xf32>
    %cst_50 = arith.constant 1.000000e+00 : f32
    %153 = vector.broadcast %cst_50 : f32 to vector<1x128xf32>
    %154 = arith.select %29, %152, %153 : vector<1x128xi1>, vector<1x128xf32>
    %155 = tpu.reciprocal %154 {approx = true} : vector<1x128xf32> -> vector<1x128xf32>
    %156 = arith.mulf %154, %155 : vector<1x128xf32>
    %cst_51 = arith.constant 2.000000e+00 : f32
    %157 = vector.broadcast %cst_51 : f32 to vector<1x128xf32>
    %158 = arith.subf %157, %156 : vector<1x128xf32>
    %159 = arith.mulf %155, %158 : vector<1x128xf32>
    %cst_52 = arith.constant 0.000000e+00 : f32
    %160 = vector.broadcast %cst_52 : f32 to vector<1x128xf32>
    %161 = arith.select %29, %159, %160 : vector<1x128xi1>, vector<1x128xf32>
    %c5_i32_53 = arith.constant 5 : i32
    %162 = vector.broadcast %161 : vector<1x128xf32> to vector<8x128xf32>
    %163 = arith.mulf %23, %162 : vector<8x128xf32>
    %cst_54 = arith.constant dense<0.000000e+00> : vector<8xf32>
    %164 = vector.multi_reduction <add>, %163, %cst_54 [1] : vector<8x128xf32> to vector<8xf32>
    %165 = vector.shape_cast %164 : vector<8xf32> to vector<8x1xf32>
    %cst_55 = arith.constant 1.000000e+00 : f32
    %166 = vector.broadcast %cst_55 : f32 to vector<8x1xf32>
    %167 = arith.select %26, %165, %166 : vector<8x1xi1>, vector<8x1xf32>
    %168 = tpu.reciprocal %167 {approx = true} : vector<8x1xf32> -> vector<8x1xf32>
    %169 = arith.mulf %167, %168 : vector<8x1xf32>
    %cst_56 = arith.constant 2.000000e+00 : f32
    %170 = vector.broadcast %cst_56 : f32 to vector<8x1xf32>
    %171 = arith.subf %170, %169 : vector<8x1xf32>
    %172 = arith.mulf %168, %171 : vector<8x1xf32>
    %cst_57 = arith.constant 0.000000e+00 : f32
    %173 = vector.broadcast %cst_57 : f32 to vector<8x1xf32>
    %174 = arith.select %26, %172, %173 : vector<8x1xi1>, vector<8x1xf32>
    %175 = vector.broadcast %174 : vector<8x1xf32> to vector<8x128xf32>
    %176 = arith.mulf %23, %175 : vector<8x128xf32>
    %cst_58 = arith.constant dense<0.000000e+00> : vector<128xf32>
    %177 = vector.multi_reduction <add>, %176, %cst_58 [0] : vector<8x128xf32> to vector<128xf32>
    %178 = vector.shape_cast %177 : vector<128xf32> to vector<1x128xf32>
    %cst_59 = arith.constant 1.000000e+00 : f32
    %179 = vector.broadcast %cst_59 : f32 to vector<1x128xf32>
    %180 = arith.select %29, %178, %179 : vector<1x128xi1>, vector<1x128xf32>
    %181 = tpu.reciprocal %180 {approx = true} : vector<1x128xf32> -> vector<1x128xf32>
    %182 = arith.mulf %180, %181 : vector<1x128xf32>
    %cst_60 = arith.constant 2.000000e+00 : f32
    %183 = vector.broadcast %cst_60 : f32 to vector<1x128xf32>
    %184 = arith.subf %183, %182 : vector<1x128xf32>
    %185 = arith.mulf %181, %184 : vector<1x128xf32>
    %cst_61 = arith.constant 0.000000e+00 : f32
    %186 = vector.broadcast %cst_61 : f32 to vector<1x128xf32>
    %187 = arith.select %29, %185, %186 : vector<1x128xi1>, vector<1x128xf32>
    %c6_i32_62 = arith.constant 6 : i32
    %188 = vector.broadcast %187 : vector<1x128xf32> to vector<8x128xf32>
    %189 = arith.mulf %23, %188 : vector<8x128xf32>
    %cst_63 = arith.constant dense<0.000000e+00> : vector<8xf32>
    %190 = vector.multi_reduction <add>, %189, %cst_63 [1] : vector<8x128xf32> to vector<8xf32>
    %191 = vector.shape_cast %190 : vector<8xf32> to vector<8x1xf32>
    %cst_64 = arith.constant 1.000000e+00 : f32
    %192 = vector.broadcast %cst_64 : f32 to vector<8x1xf32>
    %193 = arith.select %26, %191, %192 : vector<8x1xi1>, vector<8x1xf32>
    %194 = tpu.reciprocal %193 {approx = true} : vector<8x1xf32> -> vector<8x1xf32>
    %195 = arith.mulf %193, %194 : vector<8x1xf32>
    %cst_65 = arith.constant 2.000000e+00 : f32
    %196 = vector.broadcast %cst_65 : f32 to vector<8x1xf32>
    %197 = arith.subf %196, %195 : vector<8x1xf32>
    %198 = arith.mulf %194, %197 : vector<8x1xf32>
    %cst_66 = arith.constant 0.000000e+00 : f32
    %199 = vector.broadcast %cst_66 : f32 to vector<8x1xf32>
    %200 = arith.select %26, %198, %199 : vector<8x1xi1>, vector<8x1xf32>
    %201 = vector.broadcast %200 : vector<8x1xf32> to vector<8x128xf32>
    %202 = arith.mulf %23, %201 : vector<8x128xf32>
    %cst_67 = arith.constant dense<0.000000e+00> : vector<128xf32>
    %203 = vector.multi_reduction <add>, %202, %cst_67 [0] : vector<8x128xf32> to vector<128xf32>
    %204 = vector.shape_cast %203 : vector<128xf32> to vector<1x128xf32>
    %cst_68 = arith.constant 1.000000e+00 : f32
    %205 = vector.broadcast %cst_68 : f32 to vector<1x128xf32>
    %206 = arith.select %29, %204, %205 : vector<1x128xi1>, vector<1x128xf32>
    %207 = tpu.reciprocal %206 {approx = true} : vector<1x128xf32> -> vector<1x128xf32>
    %208 = arith.mulf %206, %207 : vector<1x128xf32>
    %cst_69 = arith.constant 2.000000e+00 : f32
    %209 = vector.broadcast %cst_69 : f32 to vector<1x128xf32>
    %210 = arith.subf %209, %208 : vector<1x128xf32>
    %211 = arith.mulf %207, %210 : vector<1x128xf32>
    %cst_70 = arith.constant 0.000000e+00 : f32
    %212 = vector.broadcast %cst_70 : f32 to vector<1x128xf32>
    %213 = arith.select %29, %211, %212 : vector<1x128xi1>, vector<1x128xf32>
    %c7_i32_71 = arith.constant 7 : i32
    %214 = vector.broadcast %213 : vector<1x128xf32> to vector<8x128xf32>
    %215 = arith.mulf %23, %214 : vector<8x128xf32>
    %cst_72 = arith.constant dense<0.000000e+00> : vector<8xf32>
    %216 = vector.multi_reduction <add>, %215, %cst_72 [1] : vector<8x128xf32> to vector<8xf32>
    %217 = vector.shape_cast %216 : vector<8xf32> to vector<8x1xf32>
    %cst_73 = arith.constant 1.000000e+00 : f32
    %218 = vector.broadcast %cst_73 : f32 to vector<8x1xf32>
    %219 = arith.select %26, %217, %218 : vector<8x1xi1>, vector<8x1xf32>
    %220 = tpu.reciprocal %219 {approx = true} : vector<8x1xf32> -> vector<8x1xf32>
    %221 = arith.mulf %219, %220 : vector<8x1xf32>
    %cst_74 = arith.constant 2.000000e+00 : f32
    %222 = vector.broadcast %cst_74 : f32 to vector<8x1xf32>
    %223 = arith.subf %222, %221 : vector<8x1xf32>
    %224 = arith.mulf %220, %223 : vector<8x1xf32>
    %cst_75 = arith.constant 0.000000e+00 : f32
    %225 = vector.broadcast %cst_75 : f32 to vector<8x1xf32>
    %226 = arith.select %26, %224, %225 : vector<8x1xi1>, vector<8x1xf32>
    %227 = vector.broadcast %226 : vector<8x1xf32> to vector<8x128xf32>
    %228 = arith.mulf %23, %227 : vector<8x128xf32>
    %cst_76 = arith.constant dense<0.000000e+00> : vector<128xf32>
    %229 = vector.multi_reduction <add>, %228, %cst_76 [0] : vector<8x128xf32> to vector<128xf32>
    %230 = vector.shape_cast %229 : vector<128xf32> to vector<1x128xf32>
    %cst_77 = arith.constant 1.000000e+00 : f32
    %231 = vector.broadcast %cst_77 : f32 to vector<1x128xf32>
    %232 = arith.select %29, %230, %231 : vector<1x128xi1>, vector<1x128xf32>
    %233 = tpu.reciprocal %232 {approx = true} : vector<1x128xf32> -> vector<1x128xf32>
    %234 = arith.mulf %232, %233 : vector<1x128xf32>
    %cst_78 = arith.constant 2.000000e+00 : f32
    %235 = vector.broadcast %cst_78 : f32 to vector<1x128xf32>
    %236 = arith.subf %235, %234 : vector<1x128xf32>
    %237 = arith.mulf %233, %236 : vector<1x128xf32>
    %cst_79 = arith.constant 0.000000e+00 : f32
    %238 = vector.broadcast %cst_79 : f32 to vector<1x128xf32>
    %239 = arith.select %29, %237, %238 : vector<1x128xi1>, vector<1x128xf32>
    %c8_i32 = arith.constant 8 : i32
    %240 = vector.broadcast %239 : vector<1x128xf32> to vector<8x128xf32>
    %241 = arith.mulf %23, %240 : vector<8x128xf32>
    %cst_80 = arith.constant dense<0.000000e+00> : vector<8xf32>
    %242 = vector.multi_reduction <add>, %241, %cst_80 [1] : vector<8x128xf32> to vector<8xf32>
    %243 = vector.shape_cast %242 : vector<8xf32> to vector<8x1xf32>
    %cst_81 = arith.constant 1.000000e+00 : f32
    %244 = vector.broadcast %cst_81 : f32 to vector<8x1xf32>
    %245 = arith.select %26, %243, %244 : vector<8x1xi1>, vector<8x1xf32>
    %246 = tpu.reciprocal %245 {approx = true} : vector<8x1xf32> -> vector<8x1xf32>
    %247 = arith.mulf %245, %246 : vector<8x1xf32>
    %cst_82 = arith.constant 2.000000e+00 : f32
    %248 = vector.broadcast %cst_82 : f32 to vector<8x1xf32>
    %249 = arith.subf %248, %247 : vector<8x1xf32>
    %250 = arith.mulf %246, %249 : vector<8x1xf32>
    %cst_83 = arith.constant 0.000000e+00 : f32
    %251 = vector.broadcast %cst_83 : f32 to vector<8x1xf32>
    %252 = arith.select %26, %250, %251 : vector<8x1xi1>, vector<8x1xf32>
    %253 = vector.broadcast %252 : vector<8x1xf32> to vector<8x128xf32>
    %254 = arith.mulf %23, %253 : vector<8x128xf32>
    %cst_84 = arith.constant dense<0.000000e+00> : vector<128xf32>
    %255 = vector.multi_reduction <add>, %254, %cst_84 [0] : vector<8x128xf32> to vector<128xf32>
    %256 = vector.shape_cast %255 : vector<128xf32> to vector<1x128xf32>
    %cst_85 = arith.constant 1.000000e+00 : f32
    %257 = vector.broadcast %cst_85 : f32 to vector<1x128xf32>
    %258 = arith.select %29, %256, %257 : vector<1x128xi1>, vector<1x128xf32>
    %259 = tpu.reciprocal %258 {approx = true} : vector<1x128xf32> -> vector<1x128xf32>
    %260 = arith.mulf %258, %259 : vector<1x128xf32>
    %cst_86 = arith.constant 2.000000e+00 : f32
    %261 = vector.broadcast %cst_86 : f32 to vector<1x128xf32>
    %262 = arith.subf %261, %260 : vector<1x128xf32>
    %263 = arith.mulf %259, %262 : vector<1x128xf32>
    %cst_87 = arith.constant 0.000000e+00 : f32
    %264 = vector.broadcast %cst_87 : f32 to vector<1x128xf32>
    %265 = arith.select %29, %263, %264 : vector<1x128xi1>, vector<1x128xf32>
    %c9_i32 = arith.constant 9 : i32
    %266 = vector.broadcast %265 : vector<1x128xf32> to vector<8x128xf32>
    %267 = arith.mulf %23, %266 : vector<8x128xf32>
    %cst_88 = arith.constant dense<0.000000e+00> : vector<8xf32>
    %268 = vector.multi_reduction <add>, %267, %cst_88 [1] : vector<8x128xf32> to vector<8xf32>
    %269 = vector.shape_cast %268 : vector<8xf32> to vector<8x1xf32>
    %cst_89 = arith.constant 1.000000e+00 : f32
    %270 = vector.broadcast %cst_89 : f32 to vector<8x1xf32>
    %271 = arith.select %26, %269, %270 : vector<8x1xi1>, vector<8x1xf32>
    %272 = tpu.reciprocal %271 {approx = true} : vector<8x1xf32> -> vector<8x1xf32>
    %273 = arith.mulf %271, %272 : vector<8x1xf32>
    %cst_90 = arith.constant 2.000000e+00 : f32
    %274 = vector.broadcast %cst_90 : f32 to vector<8x1xf32>
    %275 = arith.subf %274, %273 : vector<8x1xf32>
    %276 = arith.mulf %272, %275 : vector<8x1xf32>
    %cst_91 = arith.constant 0.000000e+00 : f32
    %277 = vector.broadcast %cst_91 : f32 to vector<8x1xf32>
    %278 = arith.select %26, %276, %277 : vector<8x1xi1>, vector<8x1xf32>
    %279 = vector.broadcast %278 : vector<8x1xf32> to vector<8x128xf32>
    %280 = arith.mulf %23, %279 : vector<8x128xf32>
    %cst_92 = arith.constant dense<0.000000e+00> : vector<128xf32>
    %281 = vector.multi_reduction <add>, %280, %cst_92 [0] : vector<8x128xf32> to vector<128xf32>
    %282 = vector.shape_cast %281 : vector<128xf32> to vector<1x128xf32>
    %cst_93 = arith.constant 1.000000e+00 : f32
    %283 = vector.broadcast %cst_93 : f32 to vector<1x128xf32>
    %284 = arith.select %29, %282, %283 : vector<1x128xi1>, vector<1x128xf32>
    %285 = tpu.reciprocal %284 {approx = true} : vector<1x128xf32> -> vector<1x128xf32>
    %286 = arith.mulf %284, %285 : vector<1x128xf32>
    %cst_94 = arith.constant 2.000000e+00 : f32
    %287 = vector.broadcast %cst_94 : f32 to vector<1x128xf32>
    %288 = arith.subf %287, %286 : vector<1x128xf32>
    %289 = arith.mulf %285, %288 : vector<1x128xf32>
    %cst_95 = arith.constant 0.000000e+00 : f32
    %290 = vector.broadcast %cst_95 : f32 to vector<1x128xf32>
    %291 = arith.select %29, %289, %290 : vector<1x128xi1>, vector<1x128xf32>
    %c10_i32 = arith.constant 10 : i32
    %292 = vector.broadcast %291 : vector<1x128xf32> to vector<8x128xf32>
    %293 = arith.mulf %23, %292 : vector<8x128xf32>
    %cst_96 = arith.constant dense<0.000000e+00> : vector<8xf32>
    %294 = vector.multi_reduction <add>, %293, %cst_96 [1] : vector<8x128xf32> to vector<8xf32>
    %295 = vector.shape_cast %294 : vector<8xf32> to vector<8x1xf32>
    %cst_97 = arith.constant 1.000000e+00 : f32
    %296 = vector.broadcast %cst_97 : f32 to vector<8x1xf32>
    %297 = arith.select %26, %295, %296 : vector<8x1xi1>, vector<8x1xf32>
    %298 = tpu.reciprocal %297 {approx = true} : vector<8x1xf32> -> vector<8x1xf32>
    %299 = arith.mulf %297, %298 : vector<8x1xf32>
    %cst_98 = arith.constant 2.000000e+00 : f32
    %300 = vector.broadcast %cst_98 : f32 to vector<8x1xf32>
    %301 = arith.subf %300, %299 : vector<8x1xf32>
    %302 = arith.mulf %298, %301 : vector<8x1xf32>
    %cst_99 = arith.constant 0.000000e+00 : f32
    %303 = vector.broadcast %cst_99 : f32 to vector<8x1xf32>
    %304 = arith.select %26, %302, %303 : vector<8x1xi1>, vector<8x1xf32>
    %305 = vector.broadcast %304 : vector<8x1xf32> to vector<8x128xf32>
    %306 = arith.mulf %23, %305 : vector<8x128xf32>
    %cst_100 = arith.constant dense<0.000000e+00> : vector<128xf32>
    %307 = vector.multi_reduction <add>, %306, %cst_100 [0] : vector<8x128xf32> to vector<128xf32>
    %308 = vector.shape_cast %307 : vector<128xf32> to vector<1x128xf32>
    %cst_101 = arith.constant 1.000000e+00 : f32
    %309 = vector.broadcast %cst_101 : f32 to vector<1x128xf32>
    %310 = arith.select %29, %308, %309 : vector<1x128xi1>, vector<1x128xf32>
    %311 = tpu.reciprocal %310 {approx = true} : vector<1x128xf32> -> vector<1x128xf32>
    %312 = arith.mulf %310, %311 : vector<1x128xf32>
    %cst_102 = arith.constant 2.000000e+00 : f32
    %313 = vector.broadcast %cst_102 : f32 to vector<1x128xf32>
    %314 = arith.subf %313, %312 : vector<1x128xf32>
    %315 = arith.mulf %311, %314 : vector<1x128xf32>
    %cst_103 = arith.constant 0.000000e+00 : f32
    %316 = vector.broadcast %cst_103 : f32 to vector<1x128xf32>
    %317 = arith.select %29, %315, %316 : vector<1x128xi1>, vector<1x128xf32>
    %c11_i32 = arith.constant 11 : i32
    %318 = vector.broadcast %317 : vector<1x128xf32> to vector<8x128xf32>
    %319 = arith.mulf %23, %318 : vector<8x128xf32>
    %cst_104 = arith.constant dense<0.000000e+00> : vector<8xf32>
    %320 = vector.multi_reduction <add>, %319, %cst_104 [1] : vector<8x128xf32> to vector<8xf32>
    %321 = vector.shape_cast %320 : vector<8xf32> to vector<8x1xf32>
    %cst_105 = arith.constant 1.000000e+00 : f32
    %322 = vector.broadcast %cst_105 : f32 to vector<8x1xf32>
    %323 = arith.select %26, %321, %322 : vector<8x1xi1>, vector<8x1xf32>
    %324 = tpu.reciprocal %323 {approx = true} : vector<8x1xf32> -> vector<8x1xf32>
    %325 = arith.mulf %323, %324 : vector<8x1xf32>
    %cst_106 = arith.constant 2.000000e+00 : f32
    %326 = vector.broadcast %cst_106 : f32 to vector<8x1xf32>
    %327 = arith.subf %326, %325 : vector<8x1xf32>
    %328 = arith.mulf %324, %327 : vector<8x1xf32>
    %cst_107 = arith.constant 0.000000e+00 : f32
    %329 = vector.broadcast %cst_107 : f32 to vector<8x1xf32>
    %330 = arith.select %26, %328, %329 : vector<8x1xi1>, vector<8x1xf32>
    %331 = vector.broadcast %330 : vector<8x1xf32> to vector<8x128xf32>
    %332 = arith.mulf %23, %331 : vector<8x128xf32>
    %cst_108 = arith.constant dense<0.000000e+00> : vector<128xf32>
    %333 = vector.multi_reduction <add>, %332, %cst_108 [0] : vector<8x128xf32> to vector<128xf32>
    %334 = vector.shape_cast %333 : vector<128xf32> to vector<1x128xf32>
    %cst_109 = arith.constant 1.000000e+00 : f32
    %335 = vector.broadcast %cst_109 : f32 to vector<1x128xf32>
    %336 = arith.select %29, %334, %335 : vector<1x128xi1>, vector<1x128xf32>
    %337 = tpu.reciprocal %336 {approx = true} : vector<1x128xf32> -> vector<1x128xf32>
    %338 = arith.mulf %336, %337 : vector<1x128xf32>
    %cst_110 = arith.constant 2.000000e+00 : f32
    %339 = vector.broadcast %cst_110 : f32 to vector<1x128xf32>
    %340 = arith.subf %339, %338 : vector<1x128xf32>
    %341 = arith.mulf %337, %340 : vector<1x128xf32>
    %cst_111 = arith.constant 0.000000e+00 : f32
    %342 = vector.broadcast %cst_111 : f32 to vector<1x128xf32>
    %343 = arith.select %29, %341, %342 : vector<1x128xi1>, vector<1x128xf32>
    %c12_i32 = arith.constant 12 : i32
    %344 = vector.broadcast %343 : vector<1x128xf32> to vector<8x128xf32>
    %345 = arith.mulf %23, %344 : vector<8x128xf32>
    %cst_112 = arith.constant dense<0.000000e+00> : vector<8xf32>
    %346 = vector.multi_reduction <add>, %345, %cst_112 [1] : vector<8x128xf32> to vector<8xf32>
    %347 = vector.shape_cast %346 : vector<8xf32> to vector<8x1xf32>
    %cst_113 = arith.constant 1.000000e+00 : f32
    %348 = vector.broadcast %cst_113 : f32 to vector<8x1xf32>
    %349 = arith.select %26, %347, %348 : vector<8x1xi1>, vector<8x1xf32>
    %350 = tpu.reciprocal %349 {approx = true} : vector<8x1xf32> -> vector<8x1xf32>
    %351 = arith.mulf %349, %350 : vector<8x1xf32>
    %cst_114 = arith.constant 2.000000e+00 : f32
    %352 = vector.broadcast %cst_114 : f32 to vector<8x1xf32>
    %353 = arith.subf %352, %351 : vector<8x1xf32>
    %354 = arith.mulf %350, %353 : vector<8x1xf32>
    %cst_115 = arith.constant 0.000000e+00 : f32
    %355 = vector.broadcast %cst_115 : f32 to vector<8x1xf32>
    %356 = arith.select %26, %354, %355 : vector<8x1xi1>, vector<8x1xf32>
    %357 = vector.broadcast %356 : vector<8x1xf32> to vector<8x128xf32>
    %358 = arith.mulf %23, %357 : vector<8x128xf32>
    %cst_116 = arith.constant dense<0.000000e+00> : vector<128xf32>
    %359 = vector.multi_reduction <add>, %358, %cst_116 [0] : vector<8x128xf32> to vector<128xf32>
    %360 = vector.shape_cast %359 : vector<128xf32> to vector<1x128xf32>
    %cst_117 = arith.constant 1.000000e+00 : f32
    %361 = vector.broadcast %cst_117 : f32 to vector<1x128xf32>
    %362 = arith.select %29, %360, %361 : vector<1x128xi1>, vector<1x128xf32>
    %363 = tpu.reciprocal %362 {approx = true} : vector<1x128xf32> -> vector<1x128xf32>
    %364 = arith.mulf %362, %363 : vector<1x128xf32>
    %cst_118 = arith.constant 2.000000e+00 : f32
    %365 = vector.broadcast %cst_118 : f32 to vector<1x128xf32>
    %366 = arith.subf %365, %364 : vector<1x128xf32>
    %367 = arith.mulf %363, %366 : vector<1x128xf32>
    %cst_119 = arith.constant 0.000000e+00 : f32
    %368 = vector.broadcast %cst_119 : f32 to vector<1x128xf32>
    %369 = arith.select %29, %367, %368 : vector<1x128xi1>, vector<1x128xf32>
    %c13_i32 = arith.constant 13 : i32
    %370 = vector.broadcast %369 : vector<1x128xf32> to vector<8x128xf32>
    %371 = arith.mulf %23, %370 : vector<8x128xf32>
    %cst_120 = arith.constant dense<0.000000e+00> : vector<8xf32>
    %372 = vector.multi_reduction <add>, %371, %cst_120 [1] : vector<8x128xf32> to vector<8xf32>
    %373 = vector.shape_cast %372 : vector<8xf32> to vector<8x1xf32>
    %cst_121 = arith.constant 1.000000e+00 : f32
    %374 = vector.broadcast %cst_121 : f32 to vector<8x1xf32>
    %375 = arith.select %26, %373, %374 : vector<8x1xi1>, vector<8x1xf32>
    %376 = tpu.reciprocal %375 {approx = true} : vector<8x1xf32> -> vector<8x1xf32>
    %377 = arith.mulf %375, %376 : vector<8x1xf32>
    %cst_122 = arith.constant 2.000000e+00 : f32
    %378 = vector.broadcast %cst_122 : f32 to vector<8x1xf32>
    %379 = arith.subf %378, %377 : vector<8x1xf32>
    %380 = arith.mulf %376, %379 : vector<8x1xf32>
    %cst_123 = arith.constant 0.000000e+00 : f32
    %381 = vector.broadcast %cst_123 : f32 to vector<8x1xf32>
    %382 = arith.select %26, %380, %381 : vector<8x1xi1>, vector<8x1xf32>
    %383 = vector.broadcast %382 : vector<8x1xf32> to vector<8x128xf32>
    %384 = arith.mulf %23, %383 : vector<8x128xf32>
    %cst_124 = arith.constant dense<0.000000e+00> : vector<128xf32>
    %385 = vector.multi_reduction <add>, %384, %cst_124 [0] : vector<8x128xf32> to vector<128xf32>
    %386 = vector.shape_cast %385 : vector<128xf32> to vector<1x128xf32>
    %cst_125 = arith.constant 1.000000e+00 : f32
    %387 = vector.broadcast %cst_125 : f32 to vector<1x128xf32>
    %388 = arith.select %29, %386, %387 : vector<1x128xi1>, vector<1x128xf32>
    %389 = tpu.reciprocal %388 {approx = true} : vector<1x128xf32> -> vector<1x128xf32>
    %390 = arith.mulf %388, %389 : vector<1x128xf32>
    %cst_126 = arith.constant 2.000000e+00 : f32
    %391 = vector.broadcast %cst_126 : f32 to vector<1x128xf32>
    %392 = arith.subf %391, %390 : vector<1x128xf32>
    %393 = arith.mulf %389, %392 : vector<1x128xf32>
    %cst_127 = arith.constant 0.000000e+00 : f32
    %394 = vector.broadcast %cst_127 : f32 to vector<1x128xf32>
    %395 = arith.select %29, %393, %394 : vector<1x128xi1>, vector<1x128xf32>
    %c14_i32 = arith.constant 14 : i32
    %396 = vector.broadcast %395 : vector<1x128xf32> to vector<8x128xf32>
    %397 = arith.mulf %23, %396 : vector<8x128xf32>
    %cst_128 = arith.constant dense<0.000000e+00> : vector<8xf32>
    %398 = vector.multi_reduction <add>, %397, %cst_128 [1] : vector<8x128xf32> to vector<8xf32>
    %399 = vector.shape_cast %398 : vector<8xf32> to vector<8x1xf32>
    %cst_129 = arith.constant 1.000000e+00 : f32
    %400 = vector.broadcast %cst_129 : f32 to vector<8x1xf32>
    %401 = arith.select %26, %399, %400 : vector<8x1xi1>, vector<8x1xf32>
    %402 = tpu.reciprocal %401 {approx = true} : vector<8x1xf32> -> vector<8x1xf32>
    %403 = arith.mulf %401, %402 : vector<8x1xf32>
    %cst_130 = arith.constant 2.000000e+00 : f32
    %404 = vector.broadcast %cst_130 : f32 to vector<8x1xf32>
    %405 = arith.subf %404, %403 : vector<8x1xf32>
    %406 = arith.mulf %402, %405 : vector<8x1xf32>
    %cst_131 = arith.constant 0.000000e+00 : f32
    %407 = vector.broadcast %cst_131 : f32 to vector<8x1xf32>
    %408 = arith.select %26, %406, %407 : vector<8x1xi1>, vector<8x1xf32>
    %409 = vector.broadcast %408 : vector<8x1xf32> to vector<8x128xf32>
    %410 = arith.mulf %23, %409 : vector<8x128xf32>
    %cst_132 = arith.constant dense<0.000000e+00> : vector<128xf32>
    %411 = vector.multi_reduction <add>, %410, %cst_132 [0] : vector<8x128xf32> to vector<128xf32>
    %412 = vector.shape_cast %411 : vector<128xf32> to vector<1x128xf32>
    %cst_133 = arith.constant 1.000000e+00 : f32
    %413 = vector.broadcast %cst_133 : f32 to vector<1x128xf32>
    %414 = arith.select %29, %412, %413 : vector<1x128xi1>, vector<1x128xf32>
    %415 = tpu.reciprocal %414 {approx = true} : vector<1x128xf32> -> vector<1x128xf32>
    %416 = arith.mulf %414, %415 : vector<1x128xf32>
    %cst_134 = arith.constant 2.000000e+00 : f32
    %417 = vector.broadcast %cst_134 : f32 to vector<1x128xf32>
    %418 = arith.subf %417, %416 : vector<1x128xf32>
    %419 = arith.mulf %415, %418 : vector<1x128xf32>
    %cst_135 = arith.constant 0.000000e+00 : f32
    %420 = vector.broadcast %cst_135 : f32 to vector<1x128xf32>
    %421 = arith.select %29, %419, %420 : vector<1x128xi1>, vector<1x128xf32>
    %c15_i32 = arith.constant 15 : i32
    %422 = vector.broadcast %421 : vector<1x128xf32> to vector<8x128xf32>
    %423 = arith.mulf %23, %422 : vector<8x128xf32>
    %cst_136 = arith.constant dense<0.000000e+00> : vector<8xf32>
    %424 = vector.multi_reduction <add>, %423, %cst_136 [1] : vector<8x128xf32> to vector<8xf32>
    %425 = vector.shape_cast %424 : vector<8xf32> to vector<8x1xf32>
    %cst_137 = arith.constant 1.000000e+00 : f32
    %426 = vector.broadcast %cst_137 : f32 to vector<8x1xf32>
    %427 = arith.select %26, %425, %426 : vector<8x1xi1>, vector<8x1xf32>
    %428 = tpu.reciprocal %427 {approx = true} : vector<8x1xf32> -> vector<8x1xf32>
    %429 = arith.mulf %427, %428 : vector<8x1xf32>
    %cst_138 = arith.constant 2.000000e+00 : f32
    %430 = vector.broadcast %cst_138 : f32 to vector<8x1xf32>
    %431 = arith.subf %430, %429 : vector<8x1xf32>
    %432 = arith.mulf %428, %431 : vector<8x1xf32>
    %cst_139 = arith.constant 0.000000e+00 : f32
    %433 = vector.broadcast %cst_139 : f32 to vector<8x1xf32>
    %434 = arith.select %26, %432, %433 : vector<8x1xi1>, vector<8x1xf32>
    %435 = vector.broadcast %434 : vector<8x1xf32> to vector<8x128xf32>
    %436 = arith.mulf %23, %435 : vector<8x128xf32>
    %cst_140 = arith.constant dense<0.000000e+00> : vector<128xf32>
    %437 = vector.multi_reduction <add>, %436, %cst_140 [0] : vector<8x128xf32> to vector<128xf32>
    %438 = vector.shape_cast %437 : vector<128xf32> to vector<1x128xf32>
    %cst_141 = arith.constant 1.000000e+00 : f32
    %439 = vector.broadcast %cst_141 : f32 to vector<1x128xf32>
    %440 = arith.select %29, %438, %439 : vector<1x128xi1>, vector<1x128xf32>
    %441 = tpu.reciprocal %440 {approx = true} : vector<1x128xf32> -> vector<1x128xf32>
    %442 = arith.mulf %440, %441 : vector<1x128xf32>
    %cst_142 = arith.constant 2.000000e+00 : f32
    %443 = vector.broadcast %cst_142 : f32 to vector<1x128xf32>
    %444 = arith.subf %443, %442 : vector<1x128xf32>
    %445 = arith.mulf %441, %444 : vector<1x128xf32>
    %cst_143 = arith.constant 0.000000e+00 : f32
    %446 = vector.broadcast %cst_143 : f32 to vector<1x128xf32>
    %447 = arith.select %29, %445, %446 : vector<1x128xi1>, vector<1x128xf32>
    %c16_i32 = arith.constant 16 : i32
    %448 = vector.broadcast %447 : vector<1x128xf32> to vector<8x128xf32>
    %449 = arith.mulf %23, %448 : vector<8x128xf32>
    %cst_144 = arith.constant dense<0.000000e+00> : vector<8xf32>
    %450 = vector.multi_reduction <add>, %449, %cst_144 [1] : vector<8x128xf32> to vector<8xf32>
    %451 = vector.shape_cast %450 : vector<8xf32> to vector<8x1xf32>
    %cst_145 = arith.constant 1.000000e+00 : f32
    %452 = vector.broadcast %cst_145 : f32 to vector<8x1xf32>
    %453 = arith.select %26, %451, %452 : vector<8x1xi1>, vector<8x1xf32>
    %454 = tpu.reciprocal %453 {approx = true} : vector<8x1xf32> -> vector<8x1xf32>
    %455 = arith.mulf %453, %454 : vector<8x1xf32>
    %cst_146 = arith.constant 2.000000e+00 : f32
    %456 = vector.broadcast %cst_146 : f32 to vector<8x1xf32>
    %457 = arith.subf %456, %455 : vector<8x1xf32>
    %458 = arith.mulf %454, %457 : vector<8x1xf32>
    %cst_147 = arith.constant 0.000000e+00 : f32
    %459 = vector.broadcast %cst_147 : f32 to vector<8x1xf32>
    %460 = arith.select %26, %458, %459 : vector<8x1xi1>, vector<8x1xf32>
    %461 = vector.broadcast %460 : vector<8x1xf32> to vector<8x128xf32>
    %462 = arith.mulf %23, %461 : vector<8x128xf32>
    %cst_148 = arith.constant dense<0.000000e+00> : vector<128xf32>
    %463 = vector.multi_reduction <add>, %462, %cst_148 [0] : vector<8x128xf32> to vector<128xf32>
    %464 = vector.shape_cast %463 : vector<128xf32> to vector<1x128xf32>
    %cst_149 = arith.constant 1.000000e+00 : f32
    %465 = vector.broadcast %cst_149 : f32 to vector<1x128xf32>
    %466 = arith.select %29, %464, %465 : vector<1x128xi1>, vector<1x128xf32>
    %467 = tpu.reciprocal %466 {approx = true} : vector<1x128xf32> -> vector<1x128xf32>
    %468 = arith.mulf %466, %467 : vector<1x128xf32>
    %cst_150 = arith.constant 2.000000e+00 : f32
    %469 = vector.broadcast %cst_150 : f32 to vector<1x128xf32>
    %470 = arith.subf %469, %468 : vector<1x128xf32>
    %471 = arith.mulf %467, %470 : vector<1x128xf32>
    %cst_151 = arith.constant 0.000000e+00 : f32
    %472 = vector.broadcast %cst_151 : f32 to vector<1x128xf32>
    %473 = arith.select %29, %471, %472 : vector<1x128xi1>, vector<1x128xf32>
    %c17_i32 = arith.constant 17 : i32
    %474 = vector.broadcast %473 : vector<1x128xf32> to vector<8x128xf32>
    %475 = arith.mulf %23, %474 : vector<8x128xf32>
    %cst_152 = arith.constant dense<0.000000e+00> : vector<8xf32>
    %476 = vector.multi_reduction <add>, %475, %cst_152 [1] : vector<8x128xf32> to vector<8xf32>
    %477 = vector.shape_cast %476 : vector<8xf32> to vector<8x1xf32>
    %cst_153 = arith.constant 1.000000e+00 : f32
    %478 = vector.broadcast %cst_153 : f32 to vector<8x1xf32>
    %479 = arith.select %26, %477, %478 : vector<8x1xi1>, vector<8x1xf32>
    %480 = tpu.reciprocal %479 {approx = true} : vector<8x1xf32> -> vector<8x1xf32>
    %481 = arith.mulf %479, %480 : vector<8x1xf32>
    %cst_154 = arith.constant 2.000000e+00 : f32
    %482 = vector.broadcast %cst_154 : f32 to vector<8x1xf32>
    %483 = arith.subf %482, %481 : vector<8x1xf32>
    %484 = arith.mulf %480, %483 : vector<8x1xf32>
    %cst_155 = arith.constant 0.000000e+00 : f32
    %485 = vector.broadcast %cst_155 : f32 to vector<8x1xf32>
    %486 = arith.select %26, %484, %485 : vector<8x1xi1>, vector<8x1xf32>
    %487 = vector.broadcast %486 : vector<8x1xf32> to vector<8x128xf32>
    %488 = arith.mulf %23, %487 : vector<8x128xf32>
    %cst_156 = arith.constant dense<0.000000e+00> : vector<128xf32>
    %489 = vector.multi_reduction <add>, %488, %cst_156 [0] : vector<8x128xf32> to vector<128xf32>
    %490 = vector.shape_cast %489 : vector<128xf32> to vector<1x128xf32>
    %cst_157 = arith.constant 1.000000e+00 : f32
    %491 = vector.broadcast %cst_157 : f32 to vector<1x128xf32>
    %492 = arith.select %29, %490, %491 : vector<1x128xi1>, vector<1x128xf32>
    %493 = tpu.reciprocal %492 {approx = true} : vector<1x128xf32> -> vector<1x128xf32>
    %494 = arith.mulf %492, %493 : vector<1x128xf32>
    %cst_158 = arith.constant 2.000000e+00 : f32
    %495 = vector.broadcast %cst_158 : f32 to vector<1x128xf32>
    %496 = arith.subf %495, %494 : vector<1x128xf32>
    %497 = arith.mulf %493, %496 : vector<1x128xf32>
    %cst_159 = arith.constant 0.000000e+00 : f32
    %498 = vector.broadcast %cst_159 : f32 to vector<1x128xf32>
    %499 = arith.select %29, %497, %498 : vector<1x128xi1>, vector<1x128xf32>
    %c18_i32 = arith.constant 18 : i32
    %500 = vector.broadcast %499 : vector<1x128xf32> to vector<8x128xf32>
    %501 = arith.mulf %23, %500 : vector<8x128xf32>
    %cst_160 = arith.constant dense<0.000000e+00> : vector<8xf32>
    %502 = vector.multi_reduction <add>, %501, %cst_160 [1] : vector<8x128xf32> to vector<8xf32>
    %503 = vector.shape_cast %502 : vector<8xf32> to vector<8x1xf32>
    %cst_161 = arith.constant 1.000000e+00 : f32
    %504 = vector.broadcast %cst_161 : f32 to vector<8x1xf32>
    %505 = arith.select %26, %503, %504 : vector<8x1xi1>, vector<8x1xf32>
    %506 = tpu.reciprocal %505 {approx = true} : vector<8x1xf32> -> vector<8x1xf32>
    %507 = arith.mulf %505, %506 : vector<8x1xf32>
    %cst_162 = arith.constant 2.000000e+00 : f32
    %508 = vector.broadcast %cst_162 : f32 to vector<8x1xf32>
    %509 = arith.subf %508, %507 : vector<8x1xf32>
    %510 = arith.mulf %506, %509 : vector<8x1xf32>
    %cst_163 = arith.constant 0.000000e+00 : f32
    %511 = vector.broadcast %cst_163 : f32 to vector<8x1xf32>
    %512 = arith.select %26, %510, %511 : vector<8x1xi1>, vector<8x1xf32>
    %513 = vector.broadcast %512 : vector<8x1xf32> to vector<8x128xf32>
    %514 = arith.mulf %23, %513 : vector<8x128xf32>
    %cst_164 = arith.constant dense<0.000000e+00> : vector<128xf32>
    %515 = vector.multi_reduction <add>, %514, %cst_164 [0] : vector<8x128xf32> to vector<128xf32>
    %516 = vector.shape_cast %515 : vector<128xf32> to vector<1x128xf32>
    %cst_165 = arith.constant 1.000000e+00 : f32
    %517 = vector.broadcast %cst_165 : f32 to vector<1x128xf32>
    %518 = arith.select %29, %516, %517 : vector<1x128xi1>, vector<1x128xf32>
    %519 = tpu.reciprocal %518 {approx = true} : vector<1x128xf32> -> vector<1x128xf32>
    %520 = arith.mulf %518, %519 : vector<1x128xf32>
    %cst_166 = arith.constant 2.000000e+00 : f32
    %521 = vector.broadcast %cst_166 : f32 to vector<1x128xf32>
    %522 = arith.subf %521, %520 : vector<1x128xf32>
    %523 = arith.mulf %519, %522 : vector<1x128xf32>
    %cst_167 = arith.constant 0.000000e+00 : f32
    %524 = vector.broadcast %cst_167 : f32 to vector<1x128xf32>
    %525 = arith.select %29, %523, %524 : vector<1x128xi1>, vector<1x128xf32>
    %c19_i32 = arith.constant 19 : i32
    %526 = vector.broadcast %525 : vector<1x128xf32> to vector<8x128xf32>
    %527 = arith.mulf %23, %526 : vector<8x128xf32>
    %cst_168 = arith.constant dense<0.000000e+00> : vector<8xf32>
    %528 = vector.multi_reduction <add>, %527, %cst_168 [1] : vector<8x128xf32> to vector<8xf32>
    %529 = vector.shape_cast %528 : vector<8xf32> to vector<8x1xf32>
    %cst_169 = arith.constant 1.000000e+00 : f32
    %530 = vector.broadcast %cst_169 : f32 to vector<8x1xf32>
    %531 = arith.select %26, %529, %530 : vector<8x1xi1>, vector<8x1xf32>
    %532 = tpu.reciprocal %531 {approx = true} : vector<8x1xf32> -> vector<8x1xf32>
    %533 = arith.mulf %531, %532 : vector<8x1xf32>
    %cst_170 = arith.constant 2.000000e+00 : f32
    %534 = vector.broadcast %cst_170 : f32 to vector<8x1xf32>
    %535 = arith.subf %534, %533 : vector<8x1xf32>
    %536 = arith.mulf %532, %535 : vector<8x1xf32>
    %cst_171 = arith.constant 0.000000e+00 : f32
    %537 = vector.broadcast %cst_171 : f32 to vector<8x1xf32>
    %538 = arith.select %26, %536, %537 : vector<8x1xi1>, vector<8x1xf32>
    %539 = vector.broadcast %538 : vector<8x1xf32> to vector<8x128xf32>
    %540 = arith.mulf %23, %539 : vector<8x128xf32>
    %cst_172 = arith.constant dense<0.000000e+00> : vector<128xf32>
    %541 = vector.multi_reduction <add>, %540, %cst_172 [0] : vector<8x128xf32> to vector<128xf32>
    %542 = vector.shape_cast %541 : vector<128xf32> to vector<1x128xf32>
    %cst_173 = arith.constant 1.000000e+00 : f32
    %543 = vector.broadcast %cst_173 : f32 to vector<1x128xf32>
    %544 = arith.select %29, %542, %543 : vector<1x128xi1>, vector<1x128xf32>
    %545 = tpu.reciprocal %544 {approx = true} : vector<1x128xf32> -> vector<1x128xf32>
    %546 = arith.mulf %544, %545 : vector<1x128xf32>
    %cst_174 = arith.constant 2.000000e+00 : f32
    %547 = vector.broadcast %cst_174 : f32 to vector<1x128xf32>
    %548 = arith.subf %547, %546 : vector<1x128xf32>
    %549 = arith.mulf %545, %548 : vector<1x128xf32>
    %cst_175 = arith.constant 0.000000e+00 : f32
    %550 = vector.broadcast %cst_175 : f32 to vector<1x128xf32>
    %551 = arith.select %29, %549, %550 : vector<1x128xi1>, vector<1x128xf32>
    %c20_i32 = arith.constant 20 : i32
    %552 = vector.broadcast %551 : vector<1x128xf32> to vector<8x128xf32>
    %553 = arith.mulf %23, %552 : vector<8x128xf32>
    %cst_176 = arith.constant dense<0.000000e+00> : vector<8xf32>
    %554 = vector.multi_reduction <add>, %553, %cst_176 [1] : vector<8x128xf32> to vector<8xf32>
    %555 = vector.shape_cast %554 : vector<8xf32> to vector<8x1xf32>
    %cst_177 = arith.constant 1.000000e+00 : f32
    %556 = vector.broadcast %cst_177 : f32 to vector<8x1xf32>
    %557 = arith.select %26, %555, %556 : vector<8x1xi1>, vector<8x1xf32>
    %558 = tpu.reciprocal %557 {approx = true} : vector<8x1xf32> -> vector<8x1xf32>
    %559 = arith.mulf %557, %558 : vector<8x1xf32>
    %cst_178 = arith.constant 2.000000e+00 : f32
    %560 = vector.broadcast %cst_178 : f32 to vector<8x1xf32>
    %561 = arith.subf %560, %559 : vector<8x1xf32>
    %562 = arith.mulf %558, %561 : vector<8x1xf32>
    %cst_179 = arith.constant 0.000000e+00 : f32
    %563 = vector.broadcast %cst_179 : f32 to vector<8x1xf32>
    %564 = arith.select %26, %562, %563 : vector<8x1xi1>, vector<8x1xf32>
    %565 = vector.broadcast %564 : vector<8x1xf32> to vector<8x128xf32>
    %566 = arith.mulf %23, %565 : vector<8x128xf32>
    %cst_180 = arith.constant dense<0.000000e+00> : vector<128xf32>
    %567 = vector.multi_reduction <add>, %566, %cst_180 [0] : vector<8x128xf32> to vector<128xf32>
    %568 = vector.shape_cast %567 : vector<128xf32> to vector<1x128xf32>
    %cst_181 = arith.constant 1.000000e+00 : f32
    %569 = vector.broadcast %cst_181 : f32 to vector<1x128xf32>
    %570 = arith.select %29, %568, %569 : vector<1x128xi1>, vector<1x128xf32>
    %571 = tpu.reciprocal %570 {approx = true} : vector<1x128xf32> -> vector<1x128xf32>
    %572 = arith.mulf %570, %571 : vector<1x128xf32>
    %cst_182 = arith.constant 2.000000e+00 : f32
    %573 = vector.broadcast %cst_182 : f32 to vector<1x128xf32>
    %574 = arith.subf %573, %572 : vector<1x128xf32>
    %575 = arith.mulf %571, %574 : vector<1x128xf32>
    %cst_183 = arith.constant 0.000000e+00 : f32
    %576 = vector.broadcast %cst_183 : f32 to vector<1x128xf32>
    %577 = arith.select %29, %575, %576 : vector<1x128xi1>, vector<1x128xf32>
    %c21_i32 = arith.constant 21 : i32
    %578 = vector.broadcast %577 : vector<1x128xf32> to vector<8x128xf32>
    %579 = arith.mulf %23, %578 : vector<8x128xf32>
    %cst_184 = arith.constant dense<0.000000e+00> : vector<8xf32>
    %580 = vector.multi_reduction <add>, %579, %cst_184 [1] : vector<8x128xf32> to vector<8xf32>
    %581 = vector.shape_cast %580 : vector<8xf32> to vector<8x1xf32>
    %cst_185 = arith.constant 1.000000e+00 : f32
    %582 = vector.broadcast %cst_185 : f32 to vector<8x1xf32>
    %583 = arith.select %26, %581, %582 : vector<8x1xi1>, vector<8x1xf32>
    %584 = tpu.reciprocal %583 {approx = true} : vector<8x1xf32> -> vector<8x1xf32>
    %585 = arith.mulf %583, %584 : vector<8x1xf32>
    %cst_186 = arith.constant 2.000000e+00 : f32
    %586 = vector.broadcast %cst_186 : f32 to vector<8x1xf32>
    %587 = arith.subf %586, %585 : vector<8x1xf32>
    %588 = arith.mulf %584, %587 : vector<8x1xf32>
    %cst_187 = arith.constant 0.000000e+00 : f32
    %589 = vector.broadcast %cst_187 : f32 to vector<8x1xf32>
    %590 = arith.select %26, %588, %589 : vector<8x1xi1>, vector<8x1xf32>
    %591 = vector.broadcast %590 : vector<8x1xf32> to vector<8x128xf32>
    %592 = arith.mulf %23, %591 : vector<8x128xf32>
    %cst_188 = arith.constant dense<0.000000e+00> : vector<128xf32>
    %593 = vector.multi_reduction <add>, %592, %cst_188 [0] : vector<8x128xf32> to vector<128xf32>
    %594 = vector.shape_cast %593 : vector<128xf32> to vector<1x128xf32>
    %cst_189 = arith.constant 1.000000e+00 : f32
    %595 = vector.broadcast %cst_189 : f32 to vector<1x128xf32>
    %596 = arith.select %29, %594, %595 : vector<1x128xi1>, vector<1x128xf32>
    %597 = tpu.reciprocal %596 {approx = true} : vector<1x128xf32> -> vector<1x128xf32>
    %598 = arith.mulf %596, %597 : vector<1x128xf32>
    %cst_190 = arith.constant 2.000000e+00 : f32
    %599 = vector.broadcast %cst_190 : f32 to vector<1x128xf32>
    %600 = arith.subf %599, %598 : vector<1x128xf32>
    %601 = arith.mulf %597, %600 : vector<1x128xf32>
    %cst_191 = arith.constant 0.000000e+00 : f32
    %602 = vector.broadcast %cst_191 : f32 to vector<1x128xf32>
    %603 = arith.select %29, %601, %602 : vector<1x128xi1>, vector<1x128xf32>
    %c22_i32 = arith.constant 22 : i32
    %604 = vector.broadcast %603 : vector<1x128xf32> to vector<8x128xf32>
    %605 = arith.mulf %23, %604 : vector<8x128xf32>
    %cst_192 = arith.constant dense<0.000000e+00> : vector<8xf32>
    %606 = vector.multi_reduction <add>, %605, %cst_192 [1] : vector<8x128xf32> to vector<8xf32>
    %607 = vector.shape_cast %606 : vector<8xf32> to vector<8x1xf32>
    %cst_193 = arith.constant 1.000000e+00 : f32
    %608 = vector.broadcast %cst_193 : f32 to vector<8x1xf32>
    %609 = arith.select %26, %607, %608 : vector<8x1xi1>, vector<8x1xf32>
    %610 = tpu.reciprocal %609 {approx = true} : vector<8x1xf32> -> vector<8x1xf32>
    %611 = arith.mulf %609, %610 : vector<8x1xf32>
    %cst_194 = arith.constant 2.000000e+00 : f32
    %612 = vector.broadcast %cst_194 : f32 to vector<8x1xf32>
    %613 = arith.subf %612, %611 : vector<8x1xf32>
    %614 = arith.mulf %610, %613 : vector<8x1xf32>
    %cst_195 = arith.constant 0.000000e+00 : f32
    %615 = vector.broadcast %cst_195 : f32 to vector<8x1xf32>
    %616 = arith.select %26, %614, %615 : vector<8x1xi1>, vector<8x1xf32>
    %617 = vector.broadcast %616 : vector<8x1xf32> to vector<8x128xf32>
    %618 = arith.mulf %23, %617 : vector<8x128xf32>
    %cst_196 = arith.constant dense<0.000000e+00> : vector<128xf32>
    %619 = vector.multi_reduction <add>, %618, %cst_196 [0] : vector<8x128xf32> to vector<128xf32>
    %620 = vector.shape_cast %619 : vector<128xf32> to vector<1x128xf32>
    %cst_197 = arith.constant 1.000000e+00 : f32
    %621 = vector.broadcast %cst_197 : f32 to vector<1x128xf32>
    %622 = arith.select %29, %620, %621 : vector<1x128xi1>, vector<1x128xf32>
    %623 = tpu.reciprocal %622 {approx = true} : vector<1x128xf32> -> vector<1x128xf32>
    %624 = arith.mulf %622, %623 : vector<1x128xf32>
    %cst_198 = arith.constant 2.000000e+00 : f32
    %625 = vector.broadcast %cst_198 : f32 to vector<1x128xf32>
    %626 = arith.subf %625, %624 : vector<1x128xf32>
    %627 = arith.mulf %623, %626 : vector<1x128xf32>
    %cst_199 = arith.constant 0.000000e+00 : f32
    %628 = vector.broadcast %cst_199 : f32 to vector<1x128xf32>
    %629 = arith.select %29, %627, %628 : vector<1x128xi1>, vector<1x128xf32>
    %c23_i32 = arith.constant 23 : i32
    %630 = vector.broadcast %629 : vector<1x128xf32> to vector<8x128xf32>
    %631 = arith.mulf %23, %630 : vector<8x128xf32>
    %cst_200 = arith.constant dense<0.000000e+00> : vector<8xf32>
    %632 = vector.multi_reduction <add>, %631, %cst_200 [1] : vector<8x128xf32> to vector<8xf32>
    %633 = vector.shape_cast %632 : vector<8xf32> to vector<8x1xf32>
    %cst_201 = arith.constant 1.000000e+00 : f32
    %634 = vector.broadcast %cst_201 : f32 to vector<8x1xf32>
    %635 = arith.select %26, %633, %634 : vector<8x1xi1>, vector<8x1xf32>
    %636 = tpu.reciprocal %635 {approx = true} : vector<8x1xf32> -> vector<8x1xf32>
    %637 = arith.mulf %635, %636 : vector<8x1xf32>
    %cst_202 = arith.constant 2.000000e+00 : f32
    %638 = vector.broadcast %cst_202 : f32 to vector<8x1xf32>
    %639 = arith.subf %638, %637 : vector<8x1xf32>
    %640 = arith.mulf %636, %639 : vector<8x1xf32>
    %cst_203 = arith.constant 0.000000e+00 : f32
    %641 = vector.broadcast %cst_203 : f32 to vector<8x1xf32>
    %642 = arith.select %26, %640, %641 : vector<8x1xi1>, vector<8x1xf32>
    %643 = vector.broadcast %642 : vector<8x1xf32> to vector<8x128xf32>
    %644 = arith.mulf %23, %643 : vector<8x128xf32>
    %cst_204 = arith.constant dense<0.000000e+00> : vector<128xf32>
    %645 = vector.multi_reduction <add>, %644, %cst_204 [0] : vector<8x128xf32> to vector<128xf32>
    %646 = vector.shape_cast %645 : vector<128xf32> to vector<1x128xf32>
    %cst_205 = arith.constant 1.000000e+00 : f32
    %647 = vector.broadcast %cst_205 : f32 to vector<1x128xf32>
    %648 = arith.select %29, %646, %647 : vector<1x128xi1>, vector<1x128xf32>
    %649 = tpu.reciprocal %648 {approx = true} : vector<1x128xf32> -> vector<1x128xf32>
    %650 = arith.mulf %648, %649 : vector<1x128xf32>
    %cst_206 = arith.constant 2.000000e+00 : f32
    %651 = vector.broadcast %cst_206 : f32 to vector<1x128xf32>
    %652 = arith.subf %651, %650 : vector<1x128xf32>
    %653 = arith.mulf %649, %652 : vector<1x128xf32>
    %cst_207 = arith.constant 0.000000e+00 : f32
    %654 = vector.broadcast %cst_207 : f32 to vector<1x128xf32>
    %655 = arith.select %29, %653, %654 : vector<1x128xi1>, vector<1x128xf32>
    %c24_i32 = arith.constant 24 : i32
    %656 = vector.broadcast %655 : vector<1x128xf32> to vector<8x128xf32>
    %657 = arith.mulf %23, %656 : vector<8x128xf32>
    %cst_208 = arith.constant dense<0.000000e+00> : vector<8xf32>
    %658 = vector.multi_reduction <add>, %657, %cst_208 [1] : vector<8x128xf32> to vector<8xf32>
    %659 = vector.shape_cast %658 : vector<8xf32> to vector<8x1xf32>
    %cst_209 = arith.constant 1.000000e+00 : f32
    %660 = vector.broadcast %cst_209 : f32 to vector<8x1xf32>
    %661 = arith.select %26, %659, %660 : vector<8x1xi1>, vector<8x1xf32>
    %662 = tpu.reciprocal %661 {approx = true} : vector<8x1xf32> -> vector<8x1xf32>
    %663 = arith.mulf %661, %662 : vector<8x1xf32>
    %cst_210 = arith.constant 2.000000e+00 : f32
    %664 = vector.broadcast %cst_210 : f32 to vector<8x1xf32>
    %665 = arith.subf %664, %663 : vector<8x1xf32>
    %666 = arith.mulf %662, %665 : vector<8x1xf32>
    %cst_211 = arith.constant 0.000000e+00 : f32
    %667 = vector.broadcast %cst_211 : f32 to vector<8x1xf32>
    %668 = arith.select %26, %666, %667 : vector<8x1xi1>, vector<8x1xf32>
    %669 = vector.broadcast %668 : vector<8x1xf32> to vector<8x128xf32>
    %670 = arith.mulf %23, %669 : vector<8x128xf32>
    %cst_212 = arith.constant dense<0.000000e+00> : vector<128xf32>
    %671 = vector.multi_reduction <add>, %670, %cst_212 [0] : vector<8x128xf32> to vector<128xf32>
    %672 = vector.shape_cast %671 : vector<128xf32> to vector<1x128xf32>
    %cst_213 = arith.constant 1.000000e+00 : f32
    %673 = vector.broadcast %cst_213 : f32 to vector<1x128xf32>
    %674 = arith.select %29, %672, %673 : vector<1x128xi1>, vector<1x128xf32>
    %675 = tpu.reciprocal %674 {approx = true} : vector<1x128xf32> -> vector<1x128xf32>
    %676 = arith.mulf %674, %675 : vector<1x128xf32>
    %cst_214 = arith.constant 2.000000e+00 : f32
    %677 = vector.broadcast %cst_214 : f32 to vector<1x128xf32>
    %678 = arith.subf %677, %676 : vector<1x128xf32>
    %679 = arith.mulf %675, %678 : vector<1x128xf32>
    %cst_215 = arith.constant 0.000000e+00 : f32
    %680 = vector.broadcast %cst_215 : f32 to vector<1x128xf32>
    %681 = arith.select %29, %679, %680 : vector<1x128xi1>, vector<1x128xf32>
    %c25_i32 = arith.constant 25 : i32
    %682 = vector.broadcast %681 : vector<1x128xf32> to vector<8x128xf32>
    %683 = arith.mulf %23, %682 : vector<8x128xf32>
    %cst_216 = arith.constant dense<0.000000e+00> : vector<8xf32>
    %684 = vector.multi_reduction <add>, %683, %cst_216 [1] : vector<8x128xf32> to vector<8xf32>
    %685 = vector.shape_cast %684 : vector<8xf32> to vector<8x1xf32>
    %cst_217 = arith.constant 1.000000e+00 : f32
    %686 = vector.broadcast %cst_217 : f32 to vector<8x1xf32>
    %687 = arith.select %26, %685, %686 : vector<8x1xi1>, vector<8x1xf32>
    %688 = tpu.reciprocal %687 {approx = true} : vector<8x1xf32> -> vector<8x1xf32>
    %689 = arith.mulf %687, %688 : vector<8x1xf32>
    %cst_218 = arith.constant 2.000000e+00 : f32
    %690 = vector.broadcast %cst_218 : f32 to vector<8x1xf32>
    %691 = arith.subf %690, %689 : vector<8x1xf32>
    %692 = arith.mulf %688, %691 : vector<8x1xf32>
    %cst_219 = arith.constant 0.000000e+00 : f32
    %693 = vector.broadcast %cst_219 : f32 to vector<8x1xf32>
    %694 = arith.select %26, %692, %693 : vector<8x1xi1>, vector<8x1xf32>
    %695 = vector.broadcast %694 : vector<8x1xf32> to vector<8x128xf32>
    %696 = arith.mulf %23, %695 : vector<8x128xf32>
    %cst_220 = arith.constant dense<0.000000e+00> : vector<128xf32>
    %697 = vector.multi_reduction <add>, %696, %cst_220 [0] : vector<8x128xf32> to vector<128xf32>
    %698 = vector.shape_cast %697 : vector<128xf32> to vector<1x128xf32>
    %cst_221 = arith.constant 1.000000e+00 : f32
    %699 = vector.broadcast %cst_221 : f32 to vector<1x128xf32>
    %700 = arith.select %29, %698, %699 : vector<1x128xi1>, vector<1x128xf32>
    %701 = tpu.reciprocal %700 {approx = true} : vector<1x128xf32> -> vector<1x128xf32>
    %702 = arith.mulf %700, %701 : vector<1x128xf32>
    %cst_222 = arith.constant 2.000000e+00 : f32
    %703 = vector.broadcast %cst_222 : f32 to vector<1x128xf32>
    %704 = arith.subf %703, %702 : vector<1x128xf32>
    %705 = arith.mulf %701, %704 : vector<1x128xf32>
    %cst_223 = arith.constant 0.000000e+00 : f32
    %706 = vector.broadcast %cst_223 : f32 to vector<1x128xf32>
    %707 = arith.select %29, %705, %706 : vector<1x128xi1>, vector<1x128xf32>
    %c26_i32 = arith.constant 26 : i32
    %708 = vector.broadcast %707 : vector<1x128xf32> to vector<8x128xf32>
    %709 = arith.mulf %23, %708 : vector<8x128xf32>
    %cst_224 = arith.constant dense<0.000000e+00> : vector<8xf32>
    %710 = vector.multi_reduction <add>, %709, %cst_224 [1] : vector<8x128xf32> to vector<8xf32>
    %711 = vector.shape_cast %710 : vector<8xf32> to vector<8x1xf32>
    %cst_225 = arith.constant 1.000000e+00 : f32
    %712 = vector.broadcast %cst_225 : f32 to vector<8x1xf32>
    %713 = arith.select %26, %711, %712 : vector<8x1xi1>, vector<8x1xf32>
    %714 = tpu.reciprocal %713 {approx = true} : vector<8x1xf32> -> vector<8x1xf32>
    %715 = arith.mulf %713, %714 : vector<8x1xf32>
    %cst_226 = arith.constant 2.000000e+00 : f32
    %716 = vector.broadcast %cst_226 : f32 to vector<8x1xf32>
    %717 = arith.subf %716, %715 : vector<8x1xf32>
    %718 = arith.mulf %714, %717 : vector<8x1xf32>
    %cst_227 = arith.constant 0.000000e+00 : f32
    %719 = vector.broadcast %cst_227 : f32 to vector<8x1xf32>
    %720 = arith.select %26, %718, %719 : vector<8x1xi1>, vector<8x1xf32>
    %721 = vector.broadcast %720 : vector<8x1xf32> to vector<8x128xf32>
    %722 = arith.mulf %23, %721 : vector<8x128xf32>
    %cst_228 = arith.constant dense<0.000000e+00> : vector<128xf32>
    %723 = vector.multi_reduction <add>, %722, %cst_228 [0] : vector<8x128xf32> to vector<128xf32>
    %724 = vector.shape_cast %723 : vector<128xf32> to vector<1x128xf32>
    %cst_229 = arith.constant 1.000000e+00 : f32
    %725 = vector.broadcast %cst_229 : f32 to vector<1x128xf32>
    %726 = arith.select %29, %724, %725 : vector<1x128xi1>, vector<1x128xf32>
    %727 = tpu.reciprocal %726 {approx = true} : vector<1x128xf32> -> vector<1x128xf32>
    %728 = arith.mulf %726, %727 : vector<1x128xf32>
    %cst_230 = arith.constant 2.000000e+00 : f32
    %729 = vector.broadcast %cst_230 : f32 to vector<1x128xf32>
    %730 = arith.subf %729, %728 : vector<1x128xf32>
    %731 = arith.mulf %727, %730 : vector<1x128xf32>
    %cst_231 = arith.constant 0.000000e+00 : f32
    %732 = vector.broadcast %cst_231 : f32 to vector<1x128xf32>
    %733 = arith.select %29, %731, %732 : vector<1x128xi1>, vector<1x128xf32>
    %c27_i32 = arith.constant 27 : i32
    %734 = vector.broadcast %733 : vector<1x128xf32> to vector<8x128xf32>
    %735 = arith.mulf %23, %734 : vector<8x128xf32>
    %cst_232 = arith.constant dense<0.000000e+00> : vector<8xf32>
    %736 = vector.multi_reduction <add>, %735, %cst_232 [1] : vector<8x128xf32> to vector<8xf32>
    %737 = vector.shape_cast %736 : vector<8xf32> to vector<8x1xf32>
    %cst_233 = arith.constant 1.000000e+00 : f32
    %738 = vector.broadcast %cst_233 : f32 to vector<8x1xf32>
    %739 = arith.select %26, %737, %738 : vector<8x1xi1>, vector<8x1xf32>
    %740 = tpu.reciprocal %739 {approx = true} : vector<8x1xf32> -> vector<8x1xf32>
    %741 = arith.mulf %739, %740 : vector<8x1xf32>
    %cst_234 = arith.constant 2.000000e+00 : f32
    %742 = vector.broadcast %cst_234 : f32 to vector<8x1xf32>
    %743 = arith.subf %742, %741 : vector<8x1xf32>
    %744 = arith.mulf %740, %743 : vector<8x1xf32>
    %cst_235 = arith.constant 0.000000e+00 : f32
    %745 = vector.broadcast %cst_235 : f32 to vector<8x1xf32>
    %746 = arith.select %26, %744, %745 : vector<8x1xi1>, vector<8x1xf32>
    %747 = vector.broadcast %746 : vector<8x1xf32> to vector<8x128xf32>
    %748 = arith.mulf %23, %747 : vector<8x128xf32>
    %cst_236 = arith.constant dense<0.000000e+00> : vector<128xf32>
    %749 = vector.multi_reduction <add>, %748, %cst_236 [0] : vector<8x128xf32> to vector<128xf32>
    %750 = vector.shape_cast %749 : vector<128xf32> to vector<1x128xf32>
    %cst_237 = arith.constant 1.000000e+00 : f32
    %751 = vector.broadcast %cst_237 : f32 to vector<1x128xf32>
    %752 = arith.select %29, %750, %751 : vector<1x128xi1>, vector<1x128xf32>
    %753 = tpu.reciprocal %752 {approx = true} : vector<1x128xf32> -> vector<1x128xf32>
    %754 = arith.mulf %752, %753 : vector<1x128xf32>
    %cst_238 = arith.constant 2.000000e+00 : f32
    %755 = vector.broadcast %cst_238 : f32 to vector<1x128xf32>
    %756 = arith.subf %755, %754 : vector<1x128xf32>
    %757 = arith.mulf %753, %756 : vector<1x128xf32>
    %cst_239 = arith.constant 0.000000e+00 : f32
    %758 = vector.broadcast %cst_239 : f32 to vector<1x128xf32>
    %759 = arith.select %29, %757, %758 : vector<1x128xi1>, vector<1x128xf32>
    %c28_i32 = arith.constant 28 : i32
    %760 = vector.broadcast %759 : vector<1x128xf32> to vector<8x128xf32>
    %761 = arith.mulf %23, %760 : vector<8x128xf32>
    %cst_240 = arith.constant dense<0.000000e+00> : vector<8xf32>
    %762 = vector.multi_reduction <add>, %761, %cst_240 [1] : vector<8x128xf32> to vector<8xf32>
    %763 = vector.shape_cast %762 : vector<8xf32> to vector<8x1xf32>
    %cst_241 = arith.constant 1.000000e+00 : f32
    %764 = vector.broadcast %cst_241 : f32 to vector<8x1xf32>
    %765 = arith.select %26, %763, %764 : vector<8x1xi1>, vector<8x1xf32>
    %766 = tpu.reciprocal %765 {approx = true} : vector<8x1xf32> -> vector<8x1xf32>
    %767 = arith.mulf %765, %766 : vector<8x1xf32>
    %cst_242 = arith.constant 2.000000e+00 : f32
    %768 = vector.broadcast %cst_242 : f32 to vector<8x1xf32>
    %769 = arith.subf %768, %767 : vector<8x1xf32>
    %770 = arith.mulf %766, %769 : vector<8x1xf32>
    %cst_243 = arith.constant 0.000000e+00 : f32
    %771 = vector.broadcast %cst_243 : f32 to vector<8x1xf32>
    %772 = arith.select %26, %770, %771 : vector<8x1xi1>, vector<8x1xf32>
    %773 = vector.broadcast %772 : vector<8x1xf32> to vector<8x128xf32>
    %774 = arith.mulf %23, %773 : vector<8x128xf32>
    %cst_244 = arith.constant dense<0.000000e+00> : vector<128xf32>
    %775 = vector.multi_reduction <add>, %774, %cst_244 [0] : vector<8x128xf32> to vector<128xf32>
    %776 = vector.shape_cast %775 : vector<128xf32> to vector<1x128xf32>
    %cst_245 = arith.constant 1.000000e+00 : f32
    %777 = vector.broadcast %cst_245 : f32 to vector<1x128xf32>
    %778 = arith.select %29, %776, %777 : vector<1x128xi1>, vector<1x128xf32>
    %779 = tpu.reciprocal %778 {approx = true} : vector<1x128xf32> -> vector<1x128xf32>
    %780 = arith.mulf %778, %779 : vector<1x128xf32>
    %cst_246 = arith.constant 2.000000e+00 : f32
    %781 = vector.broadcast %cst_246 : f32 to vector<1x128xf32>
    %782 = arith.subf %781, %780 : vector<1x128xf32>
    %783 = arith.mulf %779, %782 : vector<1x128xf32>
    %cst_247 = arith.constant 0.000000e+00 : f32
    %784 = vector.broadcast %cst_247 : f32 to vector<1x128xf32>
    %785 = arith.select %29, %783, %784 : vector<1x128xi1>, vector<1x128xf32>
    %c29_i32 = arith.constant 29 : i32
    %786 = vector.broadcast %785 : vector<1x128xf32> to vector<8x128xf32>
    %787 = arith.mulf %23, %786 : vector<8x128xf32>
    %cst_248 = arith.constant dense<0.000000e+00> : vector<8xf32>
    %788 = vector.multi_reduction <add>, %787, %cst_248 [1] : vector<8x128xf32> to vector<8xf32>
    %789 = vector.shape_cast %788 : vector<8xf32> to vector<8x1xf32>
    %cst_249 = arith.constant 1.000000e+00 : f32
    %790 = vector.broadcast %cst_249 : f32 to vector<8x1xf32>
    %791 = arith.select %26, %789, %790 : vector<8x1xi1>, vector<8x1xf32>
    %792 = tpu.reciprocal %791 {approx = true} : vector<8x1xf32> -> vector<8x1xf32>
    %793 = arith.mulf %791, %792 : vector<8x1xf32>
    %cst_250 = arith.constant 2.000000e+00 : f32
    %794 = vector.broadcast %cst_250 : f32 to vector<8x1xf32>
    %795 = arith.subf %794, %793 : vector<8x1xf32>
    %796 = arith.mulf %792, %795 : vector<8x1xf32>
    %cst_251 = arith.constant 0.000000e+00 : f32
    %797 = vector.broadcast %cst_251 : f32 to vector<8x1xf32>
    %798 = arith.select %26, %796, %797 : vector<8x1xi1>, vector<8x1xf32>
    %799 = vector.broadcast %798 : vector<8x1xf32> to vector<8x128xf32>
    %800 = arith.mulf %23, %799 : vector<8x128xf32>
    %cst_252 = arith.constant dense<0.000000e+00> : vector<128xf32>
    %801 = vector.multi_reduction <add>, %800, %cst_252 [0] : vector<8x128xf32> to vector<128xf32>
    %802 = vector.shape_cast %801 : vector<128xf32> to vector<1x128xf32>
    %cst_253 = arith.constant 1.000000e+00 : f32
    %803 = vector.broadcast %cst_253 : f32 to vector<1x128xf32>
    %804 = arith.select %29, %802, %803 : vector<1x128xi1>, vector<1x128xf32>
    %805 = tpu.reciprocal %804 {approx = true} : vector<1x128xf32> -> vector<1x128xf32>
    %806 = arith.mulf %804, %805 : vector<1x128xf32>
    %cst_254 = arith.constant 2.000000e+00 : f32
    %807 = vector.broadcast %cst_254 : f32 to vector<1x128xf32>
    %808 = arith.subf %807, %806 : vector<1x128xf32>
    %809 = arith.mulf %805, %808 : vector<1x128xf32>
    %cst_255 = arith.constant 0.000000e+00 : f32
    %810 = vector.broadcast %cst_255 : f32 to vector<1x128xf32>
    %811 = arith.select %29, %809, %810 : vector<1x128xi1>, vector<1x128xf32>
    %812 = vector.broadcast %798 : vector<8x1xf32> to vector<8x128xf32>
    %813 = arith.mulf %23, %812 : vector<8x128xf32>
    %814 = vector.broadcast %811 : vector<1x128xf32> to vector<8x128xf32>
    %815 = arith.mulf %813, %814 : vector<8x128xf32>
    %c0_256 = arith.constant 0 : index
    %c0_257 = arith.constant 0 : index
    %c0_258 = arith.constant 0 : index
    %816 = vector.load %arg4[%c0_256, %c0_257, %c0_258] : memref<1x8x128xf32, #tpu.memory_space<vmem>>, vector<1x8x128xf32>
    %817 = vector.shape_cast %816 : vector<1x8x128xf32> to vector<8x128xf32>
    %818 = vector.shape_cast %815 : vector<8x128xf32> to vector<1x8x128xf32>
    tpu.vector_store %arg4[%c0_256, %c0_257, %c0_258], %818 {strides = array<i32>} : memref<1x8x128xf32, #tpu.memory_space<vmem>>, vector<1x8x128xf32>,
    return
  }
  func.func @transform_0(%arg0: i32) -> (i32, i32) {
    %c0_i32 = arith.constant 0 : i32
    %c0_i32_0 = arith.constant 0 : i32
    %c0_i32_1 = arith.constant 0 : i32
    return %c0_i32, %c0_i32_0 : i32, i32
  }
  func.func @transform_1(%arg0: i32) -> (i32, i32, i32) {
    %c0_i32 = arith.constant 0 : i32
    %c0_i32_0 = arith.constant 0 : i32
    %c0_i32_1 = arith.constant 0 : i32
    return %arg0, %c0_i32, %c0_i32_0 : i32, i32, i32
  }
  func.func @transform_2(%arg0: i32) -> (i32, i32) {
    %c0_i32 = arith.constant 0 : i32
    %c0_i32_0 = arith.constant 0 : i32
    %c0_i32_1 = arith.constant 0 : i32
    return %c0_i32, %c0_i32_0 : i32, i32
  }
  func.func @transform_3(%arg0: i32) -> (i32, i32, i32) {
    %c0_i32 = arith.constant 0 : i32
    %c0_i32_0 = arith.constant 0 : i32
    %c0_i32_1 = arith.constant 0 : i32
    return %arg0, %c0_i32, %c0_i32_0 : i32, i32, i32
  }
}

</mosaic_0001>

<llo_original>
// kernel: tpu_custom_call.1
$region0: #{tpu_custom_call.1}
  #allocation0 [shape = 'u32[]', space=smem, size = 0x4, offset = 0x4, fixed_abs, tag = 'smem constant byte address 0x4 - core index']
  #allocation1 [shape = 'u32[144,128]{1,0:T(1,128)}', space=vmem, size = 0x12000, scoped, tag = 'internal scratch']
  #allocation2 [shape = 'f32[1,1]{1,0:T(1,128)S(6)}', space=smem, size = 0x200, scoped, tag = 'scoped memory for tpu_custom_call.1']
  %s0 = inlined_call_operand.hbm [shape: f32[8,32], index: 0, kind: input, shape index: {}]
  %s1 = inlined_call_operand.hbm [shape: f32[2,32,128], index: 1, kind: input, shape index: {}]
  %s2 = inlined_call_operand.<no memory space> [shape: f32[1,1], index: 2, kind: input, shape index: {}]
  %s3 = inlined_call_operand.hbm [shape: f32[2,8,128], index: 3, kind: output, shape index: {}]
  %s4 = sld [smem:[#allocation0]]
  $region53: #{tpu_custom_call.1} parent=0
    _
  %s6 = ssub.s32 1, %s4
  %s7 = scalar_select 0, %s6, %s4
  %8 = sst [smem:[#allocation2]] %s2
  $region1: #{tpu_custom_call.1} parent=0
    #allocation3 [shape = 'u8[4096]{0}', space=vmem, size = 0x1000, scoped, tag = 'input window, operand 0, single buffered']
    #allocation4 [shape = 's32[2]{0}', space=sflag, size = 0x8, scoped, tag = 'scoped memory for tpu_custom_call.1']
    #allocation5 [shape = 's32[2]{0}', space=sflag, size = 0x8, scoped, tag = 'scoped memory for tpu_custom_call.1']
    #allocation6 [shape = 'u8[32768]{0}', space=vmem, size = 0x8000, scoped, tag = 'input window, operand 1']
    #allocation7 [shape = 's32[2]{0}', space=sflag, size = 0x8, scoped, tag = 'scoped memory for tpu_custom_call.1']
    #allocation8 [shape = 'u8[8192]{0}', space=vmem, size = 0x2000, scoped, tag = 'output window, operand 0']
    %9 = vsyncpa [#allocation4], 0
    %10 = vsyncpa [#allocation7], 0
    %s11 = scalar_lea.sflag [#allocation7], 1
    %12 = vsyncpa %s11, 0
    %13 = vsyncpa [#allocation5], 0
    %s14 = scalar_lea.sflag [#allocation5], 1
    %15 = vsyncpa %s14, 0
    loop: start=0, step=1, limit=4
    $region2: #{tpu_custom_call.1} parent=1 // loop_pre_header
      _
    $region3: #{tpu_custom_call.1} parent=1 // loop_header
      %s17 = sphi 0, %s21
      %p18 = scmp.ge.s32.totalorder %s17, 4
      %s25 = sphi 0, %s25
      %s27 = sphi 0, %s25
      %s28 = sphi 0, %s27
      %s42 = sphi 0, %s28
      %s48 = sphi 0, %s50
      %s51 = sphi 0, %s48
      %s52 = sphi 0, %s51
      %s68 = sphi 0, %s52
      %s72 = sphi 0, %s72
      %s74 = sphi 0, %s72
      %s75 = sphi 0, %s74
      %s89 = sphi 0, %s75
      %s95 = sphi 0, %s97
      %s98 = sphi 0, %s95
      %s99 = sphi 0, %s98
      %s115 = sphi 0, %s99
    $region4: #{tpu_custom_call.1} parent=1 // loop_header_branch
      %20 = sbr.rel (%p18) target = $region8
    $region5: #{tpu_custom_call.1} parent=1 // loop_body
      %s22 = ssub.s32 %s17, 1
      %s23 = ssub.s32 %s17, 2
      %s24 = sadd.s32 %s17, 1
      %s26 = sadd.s32 %s25, 1
      %p29 = scmp.eq.s32.totalorder %s17, 1
      %p30 = scmp.ne.s32.totalorder %s25, %s27
      %p31 = scmp.eq.s32.totalorder %s17, 0
      %p32 = por %p30, %p31
      %p33 = scmp.ne.s32.totalorder %s25, %s27
      %p34 = scmp.eq.s32.totalorder %s22, 1
      %p35 = por %p33, %p34
      %p36 = scmp.ne.s32.totalorder %s27, %s28
      %p37 = scmp.eq.s32.totalorder %s22, 0
      %p38 = por %p36, %p37
      %p39 = scmp.ne.s32.totalorder %s27, %s28
      %p40 = scmp.eq.s32.totalorder %s23, 1
      %p41 = por %p39, %p40
      %p43 = scmp.ne.s32.totalorder %s28, %s42
      %p44 = scmp.eq.s32.totalorder %s23, 0
      %p45 = por %p43, %p44
      %s46 = ssub.s32 %s17, %s24
      %p47 = scmp.eq.s32.totalorder %s46, 0
      %s49 = sadd.s32 %s48, 1
      %s50 = scalar_select %p47, %s48, %s49
      %p53 = pneg %p47
      %p54 = scmp.eq.s32.totalorder %s17, 1
      %p55 = por %p53, %p54
      %p56 = scmp.ne.s32.totalorder %s48, %s51
      %p57 = scmp.eq.s32.totalorder %s17, 0
      %p58 = por %p56, %p57
      %p59 = scmp.ne.s32.totalorder %s48, %s51
      %p60 = scmp.eq.s32.totalorder %s22, 1
      %p61 = por %p59, %p60
      %p62 = scmp.ne.s32.totalorder %s51, %s52
      %p63 = scmp.eq.s32.totalorder %s22, 0
      %p64 = por %p62, %p63
      %p65 = scmp.ne.s32.totalorder %s51, %s52
      %p66 = scmp.eq.s32.totalorder %s23, 1
      %p67 = por %p65, %p66
      %p69 = scmp.ne.s32.totalorder %s52, %s68
      %p70 = scmp.eq.s32.totalorder %s23, 0
      %p71 = por %p69, %p70
      %s73 = sadd.s32 %s72, 1
      %p76 = scmp.eq.s32.totalorder %s17, 1
      %p77 = scmp.ne.s32.totalorder %s72, %s74
      %p78 = scmp.eq.s32.totalorder %s17, 0
      %p79 = por %p77, %p78
      %p80 = scmp.ne.s32.totalorder %s72, %s74
      %p81 = scmp.eq.s32.totalorder %s22, 1
      %p82 = por %p80, %p81
      %p83 = scmp.ne.s32.totalorder %s74, %s75
      %p84 = scmp.eq.s32.totalorder %s22, 0
      %p85 = por %p83, %p84
      %p86 = scmp.ne.s32.totalorder %s74, %s75
      %p87 = scmp.eq.s32.totalorder %s23, 1
      %p88 = por %p86, %p87
      %p90 = scmp.ne.s32.totalorder %s75, %s89
      %p91 = scmp.eq.s32.totalorder %s23, 0
      %p92 = por %p90, %p91
      %s93 = ssub.s32 %s17, %s24
      %p94 = scmp.eq.s32.totalorder %s93, 0
      %s96 = sadd.s32 %s95, 1
      %s97 = scalar_select %p94, %s95, %s96
      %p100 = pneg %p94
      %p101 = scmp.eq.s32.totalorder %s17, 1
      %p102 = por %p100, %p101
      %p103 = scmp.ne.s32.totalorder %s95, %s98
      %p104 = scmp.eq.s32.totalorder %s17, 0
      %p105 = por %p103, %p104
      %p106 = scmp.ne.s32.totalorder %s95, %s98
      %p107 = scmp.eq.s32.totalorder %s22, 1
      %p108 = por %p106, %p107
      %p109 = scmp.ne.s32.totalorder %s98, %s99
      %p110 = scmp.eq.s32.totalorder %s22, 0
      %p111 = por %p109, %p110
      %p112 = scmp.ne.s32.totalorder %s98, %s99
      %p113 = scmp.eq.s32.totalorder %s23, 1
      %p114 = por %p112, %p113
      %p116 = scmp.ne.s32.totalorder %s99, %s115
      %p117 = scmp.eq.s32.totalorder %s23, 0
      %p118 = por %p116, %p117
      %p119 = scmp.le.s32.totalorder 1, %s17
      %p120 = scmp.lt.s32.totalorder %s17, 3
      %p121 = pnand %p119, %p120
      %p122 = pneg %p121
      // Predicated region
      $region9: #{tpu_custom_call.1} parent=5 // pred_check
        _
      $region10: #{tpu_custom_call.1} parent=5 // pred_check_branch
        %124 = sbr.rel (%p121) target = $region12
      $region11: #{tpu_custom_call.1} parent=5 // pred_region
        %s125 = ssub.s32 %s17, 1
        // Predicated region
        $region13: #{tpu_custom_call.1} parent=11 // pred_check
          %p126 = pneg %p38
        $region14: #{tpu_custom_call.1} parent=11 // pred_check_branch
          %128 = sbr.rel (%p126) target = $region16
        $region15: #{tpu_custom_call.1} parent=11 // pred_region
          %s130 = ssub.s32 128, 128
          %131 = vsyncadd [#allocation4], %s130
          %s133 = sshll.u32 [#allocation3], 4
          %s134 = int_to_ptr.vmem [resolvable:$true] %s133
          %136 = dma.hbm_to_vmem [thread:$0]  %s0, 128, %s134, [#allocation4]
        $region16: #{tpu_custom_call.1} parent=11 // pred_fallthru
          _
        // Predicated region
        $region17: #{tpu_custom_call.1} parent=11 // pred_check
          %p137 = pneg %p85
        $region18: #{tpu_custom_call.1} parent=11 // pred_check_branch
          %139 = sbr.rel (%p137) target = $region20
        $region19: #{tpu_custom_call.1} parent=11 // pred_region
          _
        $region20: #{tpu_custom_call.1} parent=11 // pred_fallthru
          _
      $region12: #{tpu_custom_call.1} parent=5 // pred_fallthru
        _
      %p140 = scmp.lt.s32.totalorder %s17, 2
      // Predicated region
      $region21: #{tpu_custom_call.1} parent=5 // pred_check
        %p141 = pneg %p140
      $region22: #{tpu_custom_call.1} parent=5 // pred_check_branch
        %143 = sbr.rel (%p141) target = $region24
      $region23: #{tpu_custom_call.1} parent=5 // pred_region
        // Predicated region
        $region25: #{tpu_custom_call.1} parent=23 // pred_check
          %p144 = pneg %p58
        $region26: #{tpu_custom_call.1} parent=23 // pred_check_branch
          %146 = sbr.rel (%p144) target = $region28
        $region27: #{tpu_custom_call.1} parent=23 // pred_region
          %s147 = sand.u32 %s48, 1
          %s148 = scalar_lea.sflag [#allocation7], %s147
          %s149 = sand.u32 %s48, 1
          %s150 = smul.addr %s149, 32
          %s151 = scalar_lea.vmem [#allocation6], %s150
          %s153 = ssub.s32 512, 512
          %154 = vsyncadd %s148, %s153
          %s155 = smul.addr %s17, 4
          %s156 = smul.addr %s155, 128
          %s157 = scalar_lea.hbm %s1, %s156
          %s158 = sshll.u32 %s151, 4
          %s159 = int_to_ptr.vmem [resolvable:$true] %s158
          %164 = dma.hbm_to_vmem [thread:$0]  %s157, 512, %s159, %s148, 128, 128, 8
        $region28: #{tpu_custom_call.1} parent=23 // pred_fallthru
          _
      $region24: #{tpu_custom_call.1} parent=5 // pred_fallthru
        _
      %p165 = scmp.le.s32.totalorder 1, %s17
      %p166 = scmp.lt.s32.totalorder %s17, 3
      %p167 = pnand %p165, %p166
      %p168 = pneg %p167
      // Predicated region
      $region29: #{tpu_custom_call.1} parent=5 // pred_check
        _
      $region30: #{tpu_custom_call.1} parent=5 // pred_check_branch
        %170 = sbr.rel (%p167) target = $region32
      $region31: #{tpu_custom_call.1} parent=5 // pred_region
        %s171 = ssub.s32 %s17, 1
        // Predicated region
        $region33: #{tpu_custom_call.1} parent=31 // pred_check
          %p172 = pneg %p38
        $region34: #{tpu_custom_call.1} parent=31 // pred_check_branch
          %174 = sbr.rel (%p172) target = $region36
        $region35: #{tpu_custom_call.1} parent=31 // pred_region
          %175 = dma.done [#allocation4], 128
        $region36: #{tpu_custom_call.1} parent=31 // pred_fallthru
          _
        %s176 = sand.u32 %s51, 1
        %s177 = scalar_lea.sflag [#allocation7], %s176
        %s178 = sand.u32 %s51, 1
        %s179 = smul.addr %s178, 32
        %s180 = scalar_lea.vmem [#allocation6], %s179
        // Predicated region
        $region37: #{tpu_custom_call.1} parent=31 // pred_check
          %p181 = pneg %p64
        $region38: #{tpu_custom_call.1} parent=31 // pred_check_branch
          %183 = sbr.rel (%p181) target = $region40
        $region39: #{tpu_custom_call.1} parent=31 // pred_region
          %184 = dma.done %s177, 512
        $region40: #{tpu_custom_call.1} parent=31 // pred_fallthru
          _
        %p185 = pneg %p38
        %p186 = pneg %p35
        %s187 = sand.u32 %s51, 1
        %s188 = scalar_lea.sflag [#allocation7], %s187
        %s189 = sand.u32 %s51, 1
        %s190 = smul.addr %s189, 32
        %s191 = scalar_lea.vmem [#allocation6], %s190
        %p192 = pneg %p64
        %p193 = pneg %p61
        %p194 = pneg %p85
        %p195 = pneg %p82
        %p196 = pneg %p111
        %p197 = pneg %p108
        %s198 = sand.u32 %s98, 1
        %s199 = scalar_lea.sflag [#allocation5], %s198
        %s200 = sand.u32 %s98, 1
        %s201 = smul.addr %s200, 8
        %s202 = scalar_lea.vmem [#allocation8], %s201
        %v203 = vld [vmem:[#allocation3] sm:$0xff]
        %v204 = vld [vmem:[%s180] sm:$0xff]
        %v205 = vld [vmem:[%s180 + $0x8] sm:$0xff]
        %v206 = vld [vmem:[%s180 + $0x10] sm:$0xff]
        %v207 = vld [vmem:[%s180 + $0x18] sm:$0xff]
        %s208 = sld [smem:[#allocation2]]
        %vm209 = vcmask 261120
        %v211 = vsel %vm209, %v203, 0
        %213 = vmatprep.subr.mxu0 0.0
        %v214 = vand.u32 %v204, 4294901760
        %215 = vmatpush1.msra.mxu0 %v214
        %216 = vmatprep.subr.mxu0 0.0
        %v217 = vand.u32 %v205, 4294901760
        %218 = vmatpush1.msra.mxu0 %v217
        %219 = vmatprep.subr.mxu0 0.0
        %v220 = vand.u32 %v206, 4294901760
        %221 = vmatpush1.msra.mxu0 %v220
        %222 = vmatprep.subr.mxu0 0.0
        %v223 = vand.u32 %v207, 4294901760
        %224 = vmatpush1.msra.mxu0 %v223
        %225 = vmatprep.subr.mxu0 0.0
        %226 = vmatpush1.msra.mxu0 0.0
        %227 = vmatprep.subr.mxu0 0.0
        %228 = vmatpush1.msra.mxu0 0.0
        %229 = vmatprep.subr.mxu0 0.0
        %230 = vmatpush1.msra.mxu0 0.0
        %231 = vmatprep.subr.mxu0 0.0
        %232 = vmatpush1.msra.mxu0 0.0
        %233 = vmatprep.subr.mxu0 0.0
        %234 = vmatpush1.msra.mxu0 0.0
        %235 = vmatprep.subr.mxu0 0.0
        %236 = vmatpush1.msra.mxu0 0.0
        %237 = vmatprep.subr.mxu0 0.0
        %238 = vmatpush1.msra.mxu0 0.0
        %239 = vmatprep.subr.mxu0 0.0
        %240 = vmatpush1.msra.mxu0 0.0
        %241 = vmatprep.subr.mxu0 0.0
        %242 = vmatpush1.msra.mxu0 0.0
        %243 = vmatprep.subr.mxu0 0.0
        %244 = vmatpush1.msra.mxu0 0.0
        %245 = vmatprep.subr.mxu0 0.0
        %246 = vmatpush1.msra.mxu0 0.0
        %247 = vmatprep.subr.mxu0 0.0
        %248 = vmatpush1.msra.mxu0 0.0
        %249 = vmatprep.subr.mxu0 0.0
        %250 = vmatpush1.msra.mxu0 0.0
        %251 = vmatprep.subr.mxu0 0.0
        %252 = vmatpush1.msra.mxu0 0.0
        %253 = vmatprep.subr.mxu0 0.0
        %254 = vmatpush1.msra.mxu0 0.0
        %255 = vmatprep.subr.mxu0 0.0
        %256 = vmatpush1.msra.mxu0 0.0
        %257 = vmatprep.subr.mxu0 0.0
        %258 = vmatpush1.msra.mxu0 0.0
        %259 = vmatprep.subr.mxu0 0.0
        %260 = vmatpush1.msra.mxu0 0.0
        %261 = vmatprep.subr.mxu0 0.0
        %262 = vmatpush1.msra.mxu0 0.0
        %263 = vmatprep.subr.mxu0 0.0
        %264 = vmatpush1.msra.mxu0 0.0
        %265 = vmatprep.subr.mxu0 0.0
        %266 = vmatpush1.msra.mxu0 0.0
        %267 = vmatprep.subr.mxu0 0.0
        %268 = vmatpush1.msra.mxu0 0.0
        %269 = vmatprep.subr.mxu0 0.0
        %270 = vmatpush1.msra.mxu0 0.0
        %271 = vmatprep.subr.mxu0 0.0
        %272 = vmatpush1.msra.mxu0 0.0
        %273 = vmatprep.subr.mxu0 0.0
        %274 = vmatpush1.msra.mxu0 0.0
        %275 = vmatprep.subr.mxu0 0.0
        %276 = vmatpush1.msra.mxu0 0.0
        %277 = vmatprep.subr.mxu0 0.0
        %278 = vmatpush1.msra.mxu0 0.0
        %279 = vmatprep.subr.mxu0 0.0
        %280 = vmatpush1.msra.mxu0 0.0
        %281 = vmatprep.mubr.f32.mxu0 0.0
        %v282 = vand.u32 %v211, 4294901760
        %v283 = vsub.f32 %v211, %v282
        %v284 = vand.u32 %v283, 4294901760
        %v285 = vsub.f32 %v283, %v284
        %v286 = vand.u32 %v285, 4294901760
        %287 = vmatmul.mubr.f32.gmra.mrb[0].mxu0 %v286
        %v288 = vpop.f32.mrb[0].mxu0
        %v289 = vadd.f32 0.0, %v288
        %v290 = vpop.f32.mrb[0].mxu0
        %291 = vdwg.mxu0
        %292 = vmatprep.subr.mxu0 0.0
        %v293 = vand.u32 %v204, 4294901760
        %v294 = vsub.f32 %v204, %v293
        %v295 = vand.u32 %v294, 4294901760
        %v296 = vsub.f32 %v294, %v295
        %v297 = vand.u32 %v296, 4294901760
        %298 = vmatpush1.msra.mxu0 %v297
        %299 = vmatprep.subr.mxu0 0.0
        %v300 = vand.u32 %v205, 4294901760
        %v301 = vsub.f32 %v205, %v300
        %v302 = vand.u32 %v301, 4294901760
        %v303 = vsub.f32 %v301, %v302
        %v304 = vand.u32 %v303, 4294901760
        %305 = vmatpush1.msra.mxu0 %v304
        %306 = vmatprep.subr.mxu0 0.0
        %v307 = vand.u32 %v206, 4294901760
        %v308 = vsub.f32 %v206, %v307
        %v309 = vand.u32 %v308, 4294901760
        %v310 = vsub.f32 %v308, %v309
        %v311 = vand.u32 %v310, 4294901760
        %312 = vmatpush1.msra.mxu0 %v311
        %313 = vmatprep.subr.mxu0 0.0
        %v314 = vand.u32 %v207, 4294901760
        %v315 = vsub.f32 %v207, %v314
        %v316 = vand.u32 %v315, 4294901760
        %v317 = vsub.f32 %v315, %v316
        %v318 = vand.u32 %v317, 4294901760
        %319 = vmatpush1.msra.mxu0 %v318
        %320 = vmatprep.subr.mxu0 0.0
        %321 = vmatpush1.msra.mxu0 0.0
        %322 = vmatprep.subr.mxu0 0.0
        %323 = vmatpush1.msra.mxu0 0.0
        %324 = vmatprep.subr.mxu0 0.0
        %325 = vmatpush1.msra.mxu0 0.0
        %326 = vmatprep.subr.mxu0 0.0
        %327 = vmatpush1.msra.mxu0 0.0
        %328 = vmatprep.subr.mxu0 0.0
        %329 = vmatpush1.msra.mxu0 0.0
        %330 = vmatprep.subr.mxu0 0.0
        %331 = vmatpush1.msra.mxu0 0.0
        %332 = vmatprep.subr.mxu0 0.0
        %333 = vmatpush1.msra.mxu0 0.0
        %334 = vmatprep.subr.mxu0 0.0
        %335 = vmatpush1.msra.mxu0 0.0
        %336 = vmatprep.subr.mxu0 0.0
        %337 = vmatpush1.msra.mxu0 0.0
        %338 = vmatprep.subr.mxu0 0.0
        %339 = vmatpush1.msra.mxu0 0.0
        %340 = vmatprep.subr.mxu0 0.0
        %341 = vmatpush1.msra.mxu0 0.0
        %342 = vmatprep.subr.mxu0 0.0
        %343 = vmatpush1.msra.mxu0 0.0
        %344 = vmatprep.subr.mxu0 0.0
        %345 = vmatpush1.msra.mxu0 0.0
        %346 = vmatprep.subr.mxu0 0.0
        %347 = vmatpush1.msra.mxu0 0.0
        %348 = vmatprep.subr.mxu0 0.0
        %349 = vmatpush1.msra.mxu0 0.0
        %350 = vmatprep.subr.mxu0 0.0
        %351 = vmatpush1.msra.mxu0 0.0
        %352 = vmatprep.subr.mxu0 0.0
        %353 = vmatpush1.msra.mxu0 0.0
        %354 = vmatprep.subr.mxu0 0.0
        %355 = vmatpush1.msra.mxu0 0.0
        %356 = vmatprep.subr.mxu0 0.0
        %357 = vmatpush1.msra.mxu0 0.0
        %358 = vmatprep.subr.mxu0 0.0
        %359 = vmatpush1.msra.mxu0 0.0
        %360 = vmatprep.subr.mxu0 0.0
        %361 = vmatpush1.msra.mxu0 0.0
        %362 = vmatprep.subr.mxu0 0.0
        %363 = vmatpush1.msra.mxu0 0.0
        %364 = vmatprep.subr.mxu0 0.0
        %365 = vmatpush1.msra.mxu0 0.0
        %366 = vmatprep.subr.mxu0 0.0
        %367 = vmatpush1.msra.mxu0 0.0
        %368 = vmatprep.subr.mxu0 0.0
        %369 = vmatpush1.msra.mxu0 0.0
        %370 = vmatprep.subr.mxu0 0.0
        %371 = vmatpush1.msra.mxu0 0.0
        %372 = vmatprep.subr.mxu0 0.0
        %373 = vmatpush1.msra.mxu0 0.0
        %374 = vmatprep.subr.mxu0 0.0
        %375 = vmatpush1.msra.mxu0 0.0
        %376 = vmatprep.mubr.f32.mxu0 0.0
        %v377 = vand.u32 %v211, 4294901760
        %378 = vmatmul.mubr.f32.gmra.mrb[0].mxu0 %v377
        %v379 = vpop.f32.mrb[0].mxu0
        %v380 = vadd.f32 %v289, %v379
        %v381 = vpop.f32.mrb[0].mxu0
        %382 = vdwg.mxu0
        %383 = vmatprep.subr.mxu0 0.0
        %v384 = vand.u32 %v204, 4294901760
        %v385 = vsub.f32 %v204, %v384
        %386 = vmatpush1.msra.mxu0 %v385
        %387 = vmatprep.subr.mxu0 0.0
        %v388 = vand.u32 %v205, 4294901760
        %v389 = vsub.f32 %v205, %v388
        %390 = vmatpush1.msra.mxu0 %v389
        %391 = vmatprep.subr.mxu0 0.0
        %v392 = vand.u32 %v206, 4294901760
        %v393 = vsub.f32 %v206, %v392
        %394 = vmatpush1.msra.mxu0 %v393
        %395 = vmatprep.subr.mxu0 0.0
        %v396 = vand.u32 %v207, 4294901760
        %v397 = vsub.f32 %v207, %v396
        %398 = vmatpush1.msra.mxu0 %v397
        %399 = vmatprep.subr.mxu0 0.0
        %400 = vmatpush1.msra.mxu0 0.0
        %401 = vmatprep.subr.mxu0 0.0
        %402 = vmatpush1.msra.mxu0 0.0
        %403 = vmatprep.subr.mxu0 0.0
        %404 = vmatpush1.msra.mxu0 0.0
        %405 = vmatprep.subr.mxu0 0.0
        %406 = vmatpush1.msra.mxu0 0.0
        %407 = vmatprep.subr.mxu0 0.0
        %408 = vmatpush1.msra.mxu0 0.0
        %409 = vmatprep.subr.mxu0 0.0
        %410 = vmatpush1.msra.mxu0 0.0
        %411 = vmatprep.subr.mxu0 0.0
        %412 = vmatpush1.msra.mxu0 0.0
        %413 = vmatprep.subr.mxu0 0.0
        %414 = vmatpush1.msra.mxu0 0.0
        %415 = vmatprep.subr.mxu0 0.0
        %416 = vmatpush1.msra.mxu0 0.0
        %417 = vmatprep.subr.mxu0 0.0
        %418 = vmatpush1.msra.mxu0 0.0
        %419 = vmatprep.subr.mxu0 0.0
        %420 = vmatpush1.msra.mxu0 0.0
        %421 = vmatprep.subr.mxu0 0.0
        %422 = vmatpush1.msra.mxu0 0.0
        %423 = vmatprep.subr.mxu0 0.0
        %424 = vmatpush1.msra.mxu0 0.0
        %425 = vmatprep.subr.mxu0 0.0
        %426 = vmatpush1.msra.mxu0 0.0
        %427 = vmatprep.subr.mxu0 0.0
        %428 = vmatpush1.msra.mxu0 0.0
        %429 = vmatprep.subr.mxu0 0.0
        %430 = vmatpush1.msra.mxu0 0.0
        %431 = vmatprep.subr.mxu0 0.0
        %432 = vmatpush1.msra.mxu0 0.0
        %433 = vmatprep.subr.mxu0 0.0
        %434 = vmatpush1.msra.mxu0 0.0
        %435 = vmatprep.subr.mxu0 0.0
        %436 = vmatpush1.msra.mxu0 0.0
        %437 = vmatprep.subr.mxu0 0.0
        %438 = vmatpush1.msra.mxu0 0.0
        %439 = vmatprep.subr.mxu0 0.0
        %440 = vmatpush1.msra.mxu0 0.0
        %441 = vmatprep.subr.mxu0 0.0
        %442 = vmatpush1.msra.mxu0 0.0
        %443 = vmatprep.subr.mxu0 0.0
        %444 = vmatpush1.msra.mxu0 0.0
        %445 = vmatprep.subr.mxu0 0.0
        %446 = vmatpush1.msra.mxu0 0.0
        %447 = vmatprep.subr.mxu0 0.0
        %448 = vmatpush1.msra.mxu0 0.0
        %449 = vmatprep.subr.mxu0 0.0
        %450 = vmatpush1.msra.mxu0 0.0
        %451 = vmatprep.subr.mxu0 0.0
        %452 = vmatpush1.msra.mxu0 0.0
        %453 = vmatprep.subr.mxu0 0.0
        %454 = vmatpush1.msra.mxu0 0.0
        %455 = vmatprep.mubr.f32.mxu0 0.0
        %v456 = vand.u32 %v211, 4294901760
        %v457 = vsub.f32 %v211, %v456
        %458 = vmatmul.mubr.f32.gmra.mrb[0].mxu0 %v457
        %v459 = vpop.f32.mrb[0].mxu0
        %v460 = vadd.f32 %v380, %v459
        %v461 = vpop.f32.mrb[0].mxu0
        %462 = vdwg.mxu0
        %463 = vmatprep.subr.mxu0 0.0
        %v464 = vand.u32 %v204, 4294901760
        %465 = vmatpush1.msra.mxu0 %v464
        %466 = vmatprep.subr.mxu0 0.0
        %v467 = vand.u32 %v205, 4294901760
        %468 = vmatpush1.msra.mxu0 %v467
        %469 = vmatprep.subr.mxu0 0.0
        %v470 = vand.u32 %v206, 4294901760
        %471 = vmatpush1.msra.mxu0 %v470
        %472 = vmatprep.subr.mxu0 0.0
        %v473 = vand.u32 %v207, 4294901760
        %474 = vmatpush1.msra.mxu0 %v473
        %475 = vmatprep.subr.mxu0 0.0
        %476 = vmatpush1.msra.mxu0 0.0
        %477 = vmatprep.subr.mxu0 0.0
        %478 = vmatpush1.msra.mxu0 0.0
        %479 = vmatprep.subr.mxu0 0.0
        %480 = vmatpush1.msra.mxu0 0.0
        %481 = vmatprep.subr.mxu0 0.0
        %482 = vmatpush1.msra.mxu0 0.0
        %483 = vmatprep.subr.mxu0 0.0
        %484 = vmatpush1.msra.mxu0 0.0
        %485 = vmatprep.subr.mxu0 0.0
        %486 = vmatpush1.msra.mxu0 0.0
        %487 = vmatprep.subr.mxu0 0.0
        %488 = vmatpush1.msra.mxu0 0.0
        %489 = vmatprep.subr.mxu0 0.0
        %490 = vmatpush1.msra.mxu0 0.0
        %491 = vmatprep.subr.mxu0 0.0
        %492 = vmatpush1.msra.mxu0 0.0
        %493 = vmatprep.subr.mxu0 0.0
        %494 = vmatpush1.msra.mxu0 0.0
        %495 = vmatprep.subr.mxu0 0.0
        %496 = vmatpush1.msra.mxu0 0.0
        %497 = vmatprep.subr.mxu0 0.0
        %498 = vmatpush1.msra.mxu0 0.0
        %499 = vmatprep.subr.mxu0 0.0
        %500 = vmatpush1.msra.mxu0 0.0
        %501 = vmatprep.subr.mxu0 0.0
        %502 = vmatpush1.msra.mxu0 0.0
        %503 = vmatprep.subr.mxu0 0.0
        %504 = vmatpush1.msra.mxu0 0.0
        %505 = vmatprep.subr.mxu0 0.0
        %506 = vmatpush1.msra.mxu0 0.0
        %507 = vmatprep.subr.mxu0 0.0
        %508 = vmatpush1.msra.mxu0 0.0
        %509 = vmatprep.subr.mxu0 0.0
        %510 = vmatpush1.msra.mxu0 0.0
        %511 = vmatprep.subr.mxu0 0.0
        %512 = vmatpush1.msra.mxu0 0.0
        %513 = vmatprep.subr.mxu0 0.0
        %514 = vmatpush1.msra.mxu0 0.0
        %515 = vmatprep.subr.mxu0 0.0
        %516 = vmatpush1.msra.mxu0 0.0
        %517 = vmatprep.subr.mxu0 0.0
        %518 = vmatpush1.msra.mxu0 0.0
        %519 = vmatprep.subr.mxu0 0.0
        %520 = vmatpush1.msra.mxu0 0.0
        %521 = vmatprep.subr.mxu0 0.0
        %522 = vmatpush1.msra.mxu0 0.0
        %523 = vmatprep.subr.mxu0 0.0
        %524 = vmatpush1.msra.mxu0 0.0
        %525 = vmatprep.subr.mxu0 0.0
        %526 = vmatpush1.msra.mxu0 0.0
        %527 = vmatprep.subr.mxu0 0.0
        %528 = vmatpush1.msra.mxu0 0.0
        %529 = vmatprep.subr.mxu0 0.0
        %530 = vmatpush1.msra.mxu0 0.0
        %531 = vmatprep.mubr.f32.mxu0 0.0
        %v532 = vand.u32 %v211, 4294901760
        %v533 = vsub.f32 %v211, %v532
        %v534 = vand.u32 %v533, 4294901760
        %535 = vmatmul.mubr.f32.gmra.mrb[0].mxu0 %v534
        %v536 = vpop.f32.mrb[0].mxu0
        %v537 = vadd.f32 %v460, %v536
        %v538 = vpop.f32.mrb[0].mxu0
        %539 = vdwg.mxu0
        %540 = vmatprep.subr.mxu0 0.0
        %v541 = vand.u32 %v204, 4294901760
        %v542 = vsub.f32 %v204, %v541
        %v543 = vand.u32 %v542, 4294901760
        %544 = vmatpush1.msra.mxu0 %v543
        %545 = vmatprep.subr.mxu0 0.0
        %v546 = vand.u32 %v205, 4294901760
        %v547 = vsub.f32 %v205, %v546
        %v548 = vand.u32 %v547, 4294901760
        %549 = vmatpush1.msra.mxu0 %v548
        %550 = vmatprep.subr.mxu0 0.0
        %v551 = vand.u32 %v206, 4294901760
        %v552 = vsub.f32 %v206, %v551
        %v553 = vand.u32 %v552, 4294901760
        %554 = vmatpush1.msra.mxu0 %v553
        %555 = vmatprep.subr.mxu0 0.0
        %v556 = vand.u32 %v207, 4294901760
        %v557 = vsub.f32 %v207, %v556
        %v558 = vand.u32 %v557, 4294901760
        %559 = vmatpush1.msra.mxu0 %v558
        %560 = vmatprep.subr.mxu0 0.0
        %561 = vmatpush1.msra.mxu0 0.0
        %562 = vmatprep.subr.mxu0 0.0
        %563 = vmatpush1.msra.mxu0 0.0
        %564 = vmatprep.subr.mxu0 0.0
        %565 = vmatpush1.msra.mxu0 0.0
        %566 = vmatprep.subr.mxu0 0.0
        %567 = vmatpush1.msra.mxu0 0.0
        %568 = vmatprep.subr.mxu0 0.0
        %569 = vmatpush1.msra.mxu0 0.0
        %570 = vmatprep.subr.mxu0 0.0
        %571 = vmatpush1.msra.mxu0 0.0
        %572 = vmatprep.subr.mxu0 0.0
        %573 = vmatpush1.msra.mxu0 0.0
        %574 = vmatprep.subr.mxu0 0.0
        %575 = vmatpush1.msra.mxu0 0.0
        %576 = vmatprep.subr.mxu0 0.0
        %577 = vmatpush1.msra.mxu0 0.0
        %578 = vmatprep.subr.mxu0 0.0
        %579 = vmatpush1.msra.mxu0 0.0
        %580 = vmatprep.subr.mxu0 0.0
        %581 = vmatpush1.msra.mxu0 0.0
        %582 = vmatprep.subr.mxu0 0.0
        %583 = vmatpush1.msra.mxu0 0.0
        %584 = vmatprep.subr.mxu0 0.0
        %585 = vmatpush1.msra.mxu0 0.0
        %586 = vmatprep.subr.mxu0 0.0
        %587 = vmatpush1.msra.mxu0 0.0
        %588 = vmatprep.subr.mxu0 0.0
        %589 = vmatpush1.msra.mxu0 0.0
        %590 = vmatprep.subr.mxu0 0.0
        %591 = vmatpush1.msra.mxu0 0.0
        %592 = vmatprep.subr.mxu0 0.0
        %593 = vmatpush1.msra.mxu0 0.0
        %594 = vmatprep.subr.mxu0 0.0
        %595 = vmatpush1.msra.mxu0 0.0
        %596 = vmatprep.subr.mxu0 0.0
        %597 = vmatpush1.msra.mxu0 0.0
        %598 = vmatprep.subr.mxu0 0.0
        %599 = vmatpush1.msra.mxu0 0.0
        %600 = vmatprep.subr.mxu0 0.0
        %601 = vmatpush1.msra.mxu0 0.0
        %602 = vmatprep.subr.mxu0 0.0
        %603 = vmatpush1.msra.mxu0 0.0
        %604 = vmatprep.subr.mxu0 0.0
        %605 = vmatpush1.msra.mxu0 0.0
        %606 = vmatprep.subr.mxu0 0.0
        %607 = vmatpush1.msra.mxu0 0.0
        %608 = vmatprep.subr.mxu0 0.0
        %609 = vmatpush1.msra.mxu0 0.0
        %610 = vmatprep.subr.mxu0 0.0
        %611 = vmatpush1.msra.mxu0 0.0
        %612 = vmatprep.subr.mxu0 0.0
        %613 = vmatpush1.msra.mxu0 0.0
        %614 = vmatprep.subr.mxu0 0.0
        %615 = vmatpush1.msra.mxu0 0.0
        %616 = vmatprep.mubr.f32.mxu0 0.0
        %v617 = vand.u32 %v211, 4294901760
        %618 = vmatmul.mubr.f32.gmra.mrb[0].mxu0 %v617
        %v619 = vpop.f32.mrb[0].mxu0
        %v620 = vadd.f32 %v537, %v619
        %v621 = vpop.f32.mrb[0].mxu0
        %622 = vdwg.mxu0
        %623 = vmatprep.subr.mxu0 0.0
        %v624 = vand.u32 %v204, 4294901760
        %625 = vmatpush1.msra.mxu0 %v624
        %626 = vmatprep.subr.mxu0 0.0
        %v627 = vand.u32 %v205, 4294901760
        %628 = vmatpush1.msra.mxu0 %v627
        %629 = vmatprep.subr.mxu0 0.0
        %v630 = vand.u32 %v206, 4294901760
        %631 = vmatpush1.msra.mxu0 %v630
        %632 = vmatprep.subr.mxu0 0.0
        %v633 = vand.u32 %v207, 4294901760
        %634 = vmatpush1.msra.mxu0 %v633
        %635 = vmatprep.subr.mxu0 0.0
        %636 = vmatpush1.msra.mxu0 0.0
        %637 = vmatprep.subr.mxu0 0.0
        %638 = vmatpush1.msra.mxu0 0.0
        %639 = vmatprep.subr.mxu0 0.0
        %640 = vmatpush1.msra.mxu0 0.0
        %641 = vmatprep.subr.mxu0 0.0
        %642 = vmatpush1.msra.mxu0 0.0
        %643 = vmatprep.subr.mxu0 0.0
        %644 = vmatpush1.msra.mxu0 0.0
        %645 = vmatprep.subr.mxu0 0.0
        %646 = vmatpush1.msra.mxu0 0.0
        %647 = vmatprep.subr.mxu0 0.0
        %648 = vmatpush1.msra.mxu0 0.0
        %649 = vmatprep.subr.mxu0 0.0
        %650 = vmatpush1.msra.mxu0 0.0
        %651 = vmatprep.subr.mxu0 0.0
        %652 = vmatpush1.msra.mxu0 0.0
        %653 = vmatprep.subr.mxu0 0.0
        %654 = vmatpush1.msra.mxu0 0.0
        %655 = vmatprep.subr.mxu0 0.0
        %656 = vmatpush1.msra.mxu0 0.0
        %657 = vmatprep.subr.mxu0 0.0
        %658 = vmatpush1.msra.mxu0 0.0
        %659 = vmatprep.subr.mxu0 0.0
        %660 = vmatpush1.msra.mxu0 0.0
        %661 = vmatprep.subr.mxu0 0.0
        %662 = vmatpush1.msra.mxu0 0.0
        %663 = vmatprep.subr.mxu0 0.0
        %664 = vmatpush1.msra.mxu0 0.0
        %665 = vmatprep.subr.mxu0 0.0
        %666 = vmatpush1.msra.mxu0 0.0
        %667 = vmatprep.subr.mxu0 0.0
        %668 = vmatpush1.msra.mxu0 0.0
        %669 = vmatprep.subr.mxu0 0.0
        %670 = vmatpush1.msra.mxu0 0.0
        %671 = vmatprep.subr.mxu0 0.0
        %672 = vmatpush1.msra.mxu0 0.0
        %673 = vmatprep.subr.mxu0 0.0
        %674 = vmatpush1.msra.mxu0 0.0
        %675 = vmatprep.subr.mxu0 0.0
        %676 = vmatpush1.msra.mxu0 0.0
        %677 = vmatprep.subr.mxu0 0.0
        %678 = vmatpush1.msra.mxu0 0.0
        %679 = vmatprep.subr.mxu0 0.0
        %680 = vmatpush1.msra.mxu0 0.0
        %681 = vmatprep.subr.mxu0 0.0
        %682 = vmatpush1.msra.mxu0 0.0
        %683 = vmatprep.subr.mxu0 0.0
        %684 = vmatpush1.msra.mxu0 0.0
        %685 = vmatprep.subr.mxu0 0.0
        %686 = vmatpush1.msra.mxu0 0.0
        %687 = vmatprep.subr.mxu0 0.0
        %688 = vmatpush1.msra.mxu0 0.0
        %689 = vmatprep.subr.mxu0 0.0
        %690 = vmatpush1.msra.mxu0 0.0
        %691 = vmatprep.mubr.f32.mxu0 0.0
        %v692 = vand.u32 %v211, 4294901760
        %693 = vmatmul.mubr.f32.gmra.mrb[0].mxu0 %v692
        %v694 = vpop.f32.mrb[0].mxu0
        %v695 = vadd.f32 %v620, %v694
        %v696 = vpop.f32.mrb[0].mxu0
        %697 = vdwg.mxu0
        %v698 = vlaneseq
        %v699 = vshrl.u32 %v698, 7
        %v700 = vlaneseq
        %v701 = vand.u32 %v700, 127
        %vm702 = vcmp.lt.s32.totalorder %v699, 7
        %vm703 = vcmp.lt.s32.totalorder %v701, 6
        %vm704 = vmand %vm702, %vm703
        %vm705 = vcmp.eq.s32.totalorder %v699, 6
        %vm706 = vcmp.eq.s32.totalorder %v701, 5
        %vm707 = vmor %vm705, %vm706
        %v708 = vstv %s208
        %v709 = vsel %vm707, %v708, %v695
        %v710 = vsel %vm704, %v709, -1e+30
        %v711 = vmul.f32 %v710, 10.0
        %v712 = vmul.f32 %v711, 1.442695
        %v713 = vpow.pop %v712
        %714 = vadd.xlane.f32.xlu0 %v713
        %v715 = vpop.xlane.xlu0 %714
        %v716 = vsel %vm702, %v715, 1.0
        %v717 = vrcp.pop %v716
        %v718 = vmul.f32 %v716, %v717
        %v719 = vsub.f32 2.0, %v718
        %v720 = vmul.f32 %v717, %v719
        %v721 = vsel %vm702, %v720, 0.0
        %v722 = vmul.f32 %v713, %v721
        %v723 = vrot.slane %v722, 4
        %v724 = vadd.f32 %v722, %v723
        %v725 = vrot.slane %v724, 2
        %v726 = vadd.f32 %v724, %v725
        %v727 = vrot.slane %v726, 1
        %v728 = vadd.f32 %v726, %v727
        %v729 = vsel %vm703, %v728, 1.0
        %v730 = vrcp.pop %v729
        %v731 = vmul.f32 %v729, %v730
        %v732 = vsub.f32 2.0, %v731
        %v733 = vmul.f32 %v730, %v732
        %v734 = vsel %vm703, %v733, 0.0
        %v735 = vmul.f32 %v713, %v734
        %736 = vadd.xlane.f32.xlu0 %v735
        %v737 = vpop.xlane.xlu0 %736
        %v738 = vsel %vm702, %v737, 1.0
        %v739 = vrcp.pop %v738
        %v740 = vmul.f32 %v738, %v739
        %v741 = vsub.f32 2.0, %v740
        %v742 = vmul.f32 %v739, %v741
        %v743 = vsel %vm702, %v742, 0.0
        %v744 = vmul.f32 %v713, %v743
        %v745 = vrot.slane %v744, 4
        %v746 = vadd.f32 %v744, %v745
        %v747 = vrot.slane %v746, 2
        %v748 = vadd.f32 %v746, %v747
        %v749 = vrot.slane %v748, 1
        %v750 = vadd.f32 %v748, %v749
        %v751 = vsel %vm703, %v750, 1.0
        %v752 = vrcp.pop %v751
        %v753 = vmul.f32 %v751, %v752
        %v754 = vsub.f32 2.0, %v753
        %v755 = vmul.f32 %v752, %v754
        %v756 = vsel %vm703, %v755, 0.0
        %v757 = vmul.f32 %v713, %v756
        %758 = vadd.xlane.f32.xlu0 %v757
        %v759 = vpop.xlane.xlu0 %758
        %v760 = vsel %vm702, %v759, 1.0
        %v761 = vrcp.pop %v760
        %v762 = vmul.f32 %v760, %v761
        %v763 = vsub.f32 2.0, %v762
        %v764 = vmul.f32 %v761, %v763
        %v765 = vsel %vm702, %v764, 0.0
        %v766 = vmul.f32 %v713, %v765
        %v767 = vrot.slane %v766, 4
        %v768 = vadd.f32 %v766, %v767
        %v769 = vrot.slane %v768, 2
        %v770 = vadd.f32 %v768, %v769
        %v771 = vrot.slane %v770, 1
        %v772 = vadd.f32 %v770, %v771
        %v773 = vsel %vm703, %v772, 1.0
        %v774 = vrcp.pop %v773
        %v775 = vmul.f32 %v773, %v774
        %v776 = vsub.f32 2.0, %v775
        %v777 = vmul.f32 %v774, %v776
        %v778 = vsel %vm703, %v777, 0.0
        %v779 = vmul.f32 %v713, %v778
        %780 = vadd.xlane.f32.xlu0 %v779
        %v781 = vpop.xlane.xlu0 %780
        %v782 = vsel %vm702, %v781, 1.0
        %v783 = vrcp.pop %v782
        %v784 = vmul.f32 %v782, %v783
        %v785 = vsub.f32 2.0, %v784
        %v786 = vmul.f32 %v783, %v785
        %v787 = vsel %vm702, %v786, 0.0
        %v788 = vmul.f32 %v713, %v787
        %v789 = vrot.slane %v788, 4
        %v790 = vadd.f32 %v788, %v789
        %v791 = vrot.slane %v790, 2
        %v792 = vadd.f32 %v790, %v791
        %v793 = vrot.slane %v792, 1
        %v794 = vadd.f32 %v792, %v793
        %v795 = vsel %vm703, %v794, 1.0
        %v796 = vrcp.pop %v795
        %v797 = vmul.f32 %v795, %v796
        %v798 = vsub.f32 2.0, %v797
        %v799 = vmul.f32 %v796, %v798
        %v800 = vsel %vm703, %v799, 0.0
        %v801 = vmul.f32 %v713, %v800
        %802 = vadd.xlane.f32.xlu0 %v801
        %v803 = vpop.xlane.xlu0 %802
        %v804 = vsel %vm702, %v803, 1.0
        %v805 = vrcp.pop %v804
        %v806 = vmul.f32 %v804, %v805
        %v807 = vsub.f32 2.0, %v806
        %v808 = vmul.f32 %v805, %v807
        %v809 = vsel %vm702, %v808, 0.0
        %v810 = vmul.f32 %v713, %v809
        %v811 = vrot.slane %v810, 4
        %v812 = vadd.f32 %v810, %v811
        %v813 = vrot.slane %v812, 2
        %v814 = vadd.f32 %v812, %v813
        %v815 = vrot.slane %v814, 1
        %v816 = vadd.f32 %v814, %v815
        %v817 = vsel %vm703, %v816, 1.0
        %v818 = vrcp.pop %v817
        %v819 = vmul.f32 %v817, %v818
        %v820 = vsub.f32 2.0, %v819
        %v821 = vmul.f32 %v818, %v820
        %v822 = vsel %vm703, %v821, 0.0
        %v823 = vmul.f32 %v713, %v822
        %824 = vadd.xlane.f32.xlu0 %v823
        %v825 = vpop.xlane.xlu0 %824
        %v826 = vsel %vm702, %v825, 1.0
        %v827 = vrcp.pop %v826
        %v828 = vmul.f32 %v826, %v827
        %v829 = vsub.f32 2.0, %v828
        %v830 = vmul.f32 %v827, %v829
        %v831 = vsel %vm702, %v830, 0.0
        %v832 = vmul.f32 %v713, %v831
        %v833 = vrot.slane %v832, 4
        %v834 = vadd.f32 %v832, %v833
        %v835 = vrot.slane %v834, 2
        %v836 = vadd.f32 %v834, %v835
        %v837 = vrot.slane %v836, 1
        %v838 = vadd.f32 %v836, %v837
        %v839 = vsel %vm703, %v838, 1.0
        %v840 = vrcp.pop %v839
        %v841 = vmul.f32 %v839, %v840
        %v842 = vsub.f32 2.0, %v841
        %v843 = vmul.f32 %v840, %v842
        %v844 = vsel %vm703, %v843, 0.0
        %v845 = vmul.f32 %v713, %v844
        %846 = vadd.xlane.f32.xlu0 %v845
        %v847 = vpop.xlane.xlu0 %846
        %v848 = vsel %vm702, %v847, 1.0
        %v849 = vrcp.pop %v848
        %v850 = vmul.f32 %v848, %v849
        %v851 = vsub.f32 2.0, %v850
        %v852 = vmul.f32 %v849, %v851
        %v853 = vsel %vm702, %v852, 0.0
        %v854 = vmul.f32 %v713, %v853
        %v855 = vrot.slane %v854, 4
        %v856 = vadd.f32 %v854, %v855
        %v857 = vrot.slane %v856, 2
        %v858 = vadd.f32 %v856, %v857
        %v859 = vrot.slane %v858, 1
        %v860 = vadd.f32 %v858, %v859
        %v861 = vsel %vm703, %v860, 1.0
        %v862 = vrcp.pop %v861
        %v863 = vmul.f32 %v861, %v862
        %v864 = vsub.f32 2.0, %v863
        %v865 = vmul.f32 %v862, %v864
        %v866 = vsel %vm703, %v865, 0.0
        %v867 = vmul.f32 %v713, %v866
        %868 = vadd.xlane.f32.xlu0 %v867
        %v869 = vpop.xlane.xlu0 %868
        %v870 = vsel %vm702, %v869, 1.0
        %v871 = vrcp.pop %v870
        %v872 = vmul.f32 %v870, %v871
        %v873 = vsub.f32 2.0, %v872
        %v874 = vmul.f32 %v871, %v873
        %v875 = vsel %vm702, %v874, 0.0
        %v876 = vmul.f32 %v713, %v875
        %v877 = vrot.slane %v876, 4
        %v878 = vadd.f32 %v876, %v877
        %v879 = vrot.slane %v878, 2
        %v880 = vadd.f32 %v878, %v879
        %v881 = vrot.slane %v880, 1
        %v882 = vadd.f32 %v880, %v881
        %v883 = vsel %vm703, %v882, 1.0
        %v884 = vrcp.pop %v883
        %v885 = vmul.f32 %v883, %v884
        %v886 = vsub.f32 2.0, %v885
        %v887 = vmul.f32 %v884, %v886
        %v888 = vsel %vm703, %v887, 0.0
        %v889 = vmul.f32 %v713, %v888
        %890 = vadd.xlane.f32.xlu0 %v889
        %v891 = vpop.xlane.xlu0 %890
        %v892 = vsel %vm702, %v891, 1.0
        %v893 = vrcp.pop %v892
        %v894 = vmul.f32 %v892, %v893
        %v895 = vsub.f32 2.0, %v894
        %v896 = vmul.f32 %v893, %v895
        %v897 = vsel %vm702, %v896, 0.0
        %v898 = vmul.f32 %v713, %v897
        %v899 = vrot.slane %v898, 4
        %v900 = vadd.f32 %v898, %v899
        %v901 = vrot.slane %v900, 2
        %v902 = vadd.f32 %v900, %v901
        %v903 = vrot.slane %v902, 1
        %v904 = vadd.f32 %v902, %v903
        %v905 = vsel %vm703, %v904, 1.0
        %v906 = vrcp.pop %v905
        %v907 = vmul.f32 %v905, %v906
        %v908 = vsub.f32 2.0, %v907
        %v909 = vmul.f32 %v906, %v908
        %v910 = vsel %vm703, %v909, 0.0
        %v911 = vmul.f32 %v713, %v910
        %912 = vadd.xlane.f32.xlu0 %v911
        %v913 = vpop.xlane.xlu0 %912
        %v914 = vsel %vm702, %v913, 1.0
        %v915 = vrcp.pop %v914
        %v916 = vmul.f32 %v914, %v915
        %v917 = vsub.f32 2.0, %v916
        %v918 = vmul.f32 %v915, %v917
        %v919 = vsel %vm702, %v918, 0.0
        %v920 = vmul.f32 %v713, %v919
        %v921 = vrot.slane %v920, 4
        %v922 = vadd.f32 %v920, %v921
        %v923 = vrot.slane %v922, 2
        %v924 = vadd.f32 %v922, %v923
        %v925 = vrot.slane %v924, 1
        %v926 = vadd.f32 %v924, %v925
        %v927 = vsel %vm703, %v926, 1.0
        %v928 = vrcp.pop %v927
        %v929 = vmul.f32 %v927, %v928
        %v930 = vsub.f32 2.0, %v929
        %v931 = vmul.f32 %v928, %v930
        %v932 = vsel %vm703, %v931, 0.0
        %v933 = vmul.f32 %v713, %v932
        %934 = vadd.xlane.f32.xlu0 %v933
        %v935 = vpop.xlane.xlu0 %934
        %v936 = vsel %vm702, %v935, 1.0
        %v937 = vrcp.pop %v936
        %v938 = vmul.f32 %v936, %v937
        %v939 = vsub.f32 2.0, %v938
        %v940 = vmul.f32 %v937, %v939
        %v941 = vsel %vm702, %v940, 0.0
        %v942 = vmul.f32 %v713, %v941
        %v943 = vrot.slane %v942, 4
        %v944 = vadd.f32 %v942, %v943
        %v945 = vrot.slane %v944, 2
        %v946 = vadd.f32 %v944, %v945
        %v947 = vrot.slane %v946, 1
        %v948 = vadd.f32 %v946, %v947
        %v949 = vsel %vm703, %v948, 1.0
        %v950 = vrcp.pop %v949
        %v951 = vmul.f32 %v949, %v950
        %v952 = vsub.f32 2.0, %v951
        %v953 = vmul.f32 %v950, %v952
        %v954 = vsel %vm703, %v953, 0.0
        %v955 = vmul.f32 %v713, %v954
        %956 = vadd.xlane.f32.xlu0 %v955
        %v957 = vpop.xlane.xlu0 %956
        %v958 = vsel %vm702, %v957, 1.0
        %v959 = vrcp.pop %v958
        %v960 = vmul.f32 %v958, %v959
        %v961 = vsub.f32 2.0, %v960
        %v962 = vmul.f32 %v959, %v961
        %v963 = vsel %vm702, %v962, 0.0
        %v964 = vmul.f32 %v713, %v963
        %v965 = vrot.slane %v964, 4
        %v966 = vadd.f32 %v964, %v965
        %v967 = vrot.slane %v966, 2
        %v968 = vadd.f32 %v966, %v967
        %v969 = vrot.slane %v968, 1
        %v970 = vadd.f32 %v968, %v969
        %v971 = vsel %vm703, %v970, 1.0
        %v972 = vrcp.pop %v971
        %v973 = vmul.f32 %v971, %v972
        %v974 = vsub.f32 2.0, %v973
        %v975 = vmul.f32 %v972, %v974
        %v976 = vsel %vm703, %v975, 0.0
        %v977 = vmul.f32 %v713, %v976
        %978 = vadd.xlane.f32.xlu0 %v977
        %v979 = vpop.xlane.xlu0 %978
        %v980 = vsel %vm702, %v979, 1.0
        %v981 = vrcp.pop %v980
        %v982 = vmul.f32 %v980, %v981
        %v983 = vsub.f32 2.0, %v982
        %v984 = vmul.f32 %v981, %v983
        %v985 = vsel %vm702, %v984, 0.0
        %v986 = vmul.f32 %v713, %v985
        %v987 = vrot.slane %v986, 4
        %v988 = vadd.f32 %v986, %v987
        %v989 = vrot.slane %v988, 2
        %v990 = vadd.f32 %v988, %v989
        %v991 = vrot.slane %v990, 1
        %v992 = vadd.f32 %v990, %v991
        %v993 = vsel %vm703, %v992, 1.0
        %v994 = vrcp.pop %v993
        %v995 = vmul.f32 %v993, %v994
        %v996 = vsub.f32 2.0, %v995
        %v997 = vmul.f32 %v994, %v996
        %v998 = vsel %vm703, %v997, 0.0
        %v999 = vmul.f32 %v713, %v998
        %1000 = vadd.xlane.f32.xlu0 %v999
        %v1001 = vpop.xlane.xlu0 %1000
        %v1002 = vsel %vm702, %v1001, 1.0
        %v1003 = vrcp.pop %v1002
        %v1004 = vmul.f32 %v1002, %v1003
        %v1005 = vsub.f32 2.0, %v1004
        %v1006 = vmul.f32 %v1003, %v1005
        %v1007 = vsel %vm702, %v1006, 0.0
        %v1008 = vmul.f32 %v713, %v1007
        %v1009 = vrot.slane %v1008, 4
        %v1010 = vadd.f32 %v1008, %v1009
        %v1011 = vrot.slane %v1010, 2
        %v1012 = vadd.f32 %v1010, %v1011
        %v1013 = vrot.slane %v1012, 1
        %v1014 = vadd.f32 %v1012, %v1013
        %v1015 = vsel %vm703, %v1014, 1.0
        %v1016 = vrcp.pop %v1015
        %v1017 = vmul.f32 %v1015, %v1016
        %v1018 = vsub.f32 2.0, %v1017
        %v1019 = vmul.f32 %v1016, %v1018
        %v1020 = vsel %vm703, %v1019, 0.0
        %v1021 = vmul.f32 %v713, %v1020
        %1022 = vadd.xlane.f32.xlu0 %v1021
        %v1023 = vpop.xlane.xlu0 %1022
        %v1024 = vsel %vm702, %v1023, 1.0
        %v1025 = vrcp.pop %v1024
        %v1026 = vmul.f32 %v1024, %v1025
        %v1027 = vsub.f32 2.0, %v1026
        %v1028 = vmul.f32 %v1025, %v1027
        %v1029 = vsel %vm702, %v1028, 0.0
        %v1030 = vmul.f32 %v713, %v1029
        %v1031 = vrot.slane %v1030, 4
        %v1032 = vadd.f32 %v1030, %v1031
        %v1033 = vrot.slane %v1032, 2
        %v1034 = vadd.f32 %v1032, %v1033
        %v1035 = vrot.slane %v1034, 1
        %v1036 = vadd.f32 %v1034, %v1035
        %v1037 = vsel %vm703, %v1036, 1.0
        %v1038 = vrcp.pop %v1037
        %v1039 = vmul.f32 %v1037, %v1038
        %v1040 = vsub.f32 2.0, %v1039
        %v1041 = vmul.f32 %v1038, %v1040
        %v1042 = vsel %vm703, %v1041, 0.0
        %v1043 = vmul.f32 %v713, %v1042
        %1044 = vadd.xlane.f32.xlu0 %v1043
        %v1045 = vpop.xlane.xlu0 %1044
        %v1046 = vsel %vm702, %v1045, 1.0
        %v1047 = vrcp.pop %v1046
        %v1048 = vmul.f32 %v1046, %v1047
        %v1049 = vsub.f32 2.0, %v1048
        %v1050 = vmul.f32 %v1047, %v1049
        %v1051 = vsel %vm702, %v1050, 0.0
        %v1052 = vmul.f32 %v713, %v1051
        %v1053 = vrot.slane %v1052, 4
        %v1054 = vadd.f32 %v1052, %v1053
        %v1055 = vrot.slane %v1054, 2
        %v1056 = vadd.f32 %v1054, %v1055
        %v1057 = vrot.slane %v1056, 1
        %v1058 = vadd.f32 %v1056, %v1057
        %v1059 = vsel %vm703, %v1058, 1.0
        %v1060 = vrcp.pop %v1059
        %v1061 = vmul.f32 %v1059, %v1060
        %v1062 = vsub.f32 2.0, %v1061
        %v1063 = vmul.f32 %v1060, %v1062
        %v1064 = vsel %vm703, %v1063, 0.0
        %v1065 = vmul.f32 %v713, %v1064
        %1066 = vadd.xlane.f32.xlu0 %v1065
        %v1067 = vpop.xlane.xlu0 %1066
        %v1068 = vsel %vm702, %v1067, 1.0
        %v1069 = vrcp.pop %v1068
        %v1070 = vmul.f32 %v1068, %v1069
        %v1071 = vsub.f32 2.0, %v1070
        %v1072 = vmul.f32 %v1069, %v1071
        %v1073 = vsel %vm702, %v1072, 0.0
        %v1074 = vmul.f32 %v713, %v1073
        %v1075 = vrot.slane %v1074, 4
        %v1076 = vadd.f32 %v1074, %v1075
        %v1077 = vrot.slane %v1076, 2
        %v1078 = vadd.f32 %v1076, %v1077
        %v1079 = vrot.slane %v1078, 1
        %v1080 = vadd.f32 %v1078, %v1079
        %v1081 = vsel %vm703, %v1080, 1.0
        %v1082 = vrcp.pop %v1081
        %v1083 = vmul.f32 %v1081, %v1082
        %v1084 = vsub.f32 2.0, %v1083
        %v1085 = vmul.f32 %v1082, %v1084
        %v1086 = vsel %vm703, %v1085, 0.0
        %v1087 = vmul.f32 %v713, %v1086
        %1088 = vadd.xlane.f32.xlu0 %v1087
        %v1089 = vpop.xlane.xlu0 %1088
        %v1090 = vsel %vm702, %v1089, 1.0
        %v1091 = vrcp.pop %v1090
        %v1092 = vmul.f32 %v1090, %v1091
        %v1093 = vsub.f32 2.0, %v1092
        %v1094 = vmul.f32 %v1091, %v1093
        %v1095 = vsel %vm702, %v1094, 0.0
        %v1096 = vmul.f32 %v713, %v1095
        %v1097 = vrot.slane %v1096, 4
        %v1098 = vadd.f32 %v1096, %v1097
        %v1099 = vrot.slane %v1098, 2
        %v1100 = vadd.f32 %v1098, %v1099
        %v1101 = vrot.slane %v1100, 1
        %v1102 = vadd.f32 %v1100, %v1101
        %v1103 = vsel %vm703, %v1102, 1.0
        %v1104 = vrcp.pop %v1103
        %v1105 = vmul.f32 %v1103, %v1104
        %v1106 = vsub.f32 2.0, %v1105
        %v1107 = vmul.f32 %v1104, %v1106
        %v1108 = vsel %vm703, %v1107, 0.0
        %v1109 = vmul.f32 %v713, %v1108
        %1110 = vadd.xlane.f32.xlu0 %v1109
        %v1111 = vpop.xlane.xlu0 %1110
        %v1112 = vsel %vm702, %v1111, 1.0
        %v1113 = vrcp.pop %v1112
        %v1114 = vmul.f32 %v1112, %v1113
        %v1115 = vsub.f32 2.0, %v1114
        %v1116 = vmul.f32 %v1113, %v1115
        %v1117 = vsel %vm702, %v1116, 0.0
        %v1118 = vmul.f32 %v713, %v1117
        %v1119 = vrot.slane %v1118, 4
        %v1120 = vadd.f32 %v1118, %v1119
        %v1121 = vrot.slane %v1120, 2
        %v1122 = vadd.f32 %v1120, %v1121
        %v1123 = vrot.slane %v1122, 1
        %v1124 = vadd.f32 %v1122, %v1123
        %v1125 = vsel %vm703, %v1124, 1.0
        %v1126 = vrcp.pop %v1125
        %v1127 = vmul.f32 %v1125, %v1126
        %v1128 = vsub.f32 2.0, %v1127
        %v1129 = vmul.f32 %v1126, %v1128
        %v1130 = vsel %vm703, %v1129, 0.0
        %v1131 = vmul.f32 %v713, %v1130
        %1132 = vadd.xlane.f32.xlu0 %v1131
        %v1133 = vpop.xlane.xlu0 %1132
        %v1134 = vsel %vm702, %v1133, 1.0
        %v1135 = vrcp.pop %v1134
        %v1136 = vmul.f32 %v1134, %v1135
        %v1137 = vsub.f32 2.0, %v1136
        %v1138 = vmul.f32 %v1135, %v1137
        %v1139 = vsel %vm702, %v1138, 0.0
        %v1140 = vmul.f32 %v713, %v1139
        %v1141 = vrot.slane %v1140, 4
        %v1142 = vadd.f32 %v1140, %v1141
        %v1143 = vrot.slane %v1142, 2
        %v1144 = vadd.f32 %v1142, %v1143
        %v1145 = vrot.slane %v1144, 1
        %v1146 = vadd.f32 %v1144, %v1145
        %v1147 = vsel %vm703, %v1146, 1.0
        %v1148 = vrcp.pop %v1147
        %v1149 = vmul.f32 %v1147, %v1148
        %v1150 = vsub.f32 2.0, %v1149
        %v1151 = vmul.f32 %v1148, %v1150
        %v1152 = vsel %vm703, %v1151, 0.0
        %v1153 = vmul.f32 %v713, %v1152
        %1154 = vadd.xlane.f32.xlu0 %v1153
        %v1155 = vpop.xlane.xlu0 %1154
        %v1156 = vsel %vm702, %v1155, 1.0
        %v1157 = vrcp.pop %v1156
        %v1158 = vmul.f32 %v1156, %v1157
        %v1159 = vsub.f32 2.0, %v1158
        %v1160 = vmul.f32 %v1157, %v1159
        %v1161 = vsel %vm702, %v1160, 0.0
        %v1162 = vmul.f32 %v713, %v1161
        %v1163 = vrot.slane %v1162, 4
        %v1164 = vadd.f32 %v1162, %v1163
        %v1165 = vrot.slane %v1164, 2
        %v1166 = vadd.f32 %v1164, %v1165
        %v1167 = vrot.slane %v1166, 1
        %v1168 = vadd.f32 %v1166, %v1167
        %v1169 = vsel %vm703, %v1168, 1.0
        %v1170 = vrcp.pop %v1169
        %v1171 = vmul.f32 %v1169, %v1170
        %v1172 = vsub.f32 2.0, %v1171
        %v1173 = vmul.f32 %v1170, %v1172
        %v1174 = vsel %vm703, %v1173, 0.0
        %v1175 = vmul.f32 %v713, %v1174
        %1176 = vadd.xlane.f32.xlu0 %v1175
        %v1177 = vpop.xlane.xlu0 %1176
        %v1178 = vsel %vm702, %v1177, 1.0
        %v1179 = vrcp.pop %v1178
        %v1180 = vmul.f32 %v1178, %v1179
        %v1181 = vsub.f32 2.0, %v1180
        %v1182 = vmul.f32 %v1179, %v1181
        %v1183 = vsel %vm702, %v1182, 0.0
        %v1184 = vmul.f32 %v713, %v1183
        %v1185 = vrot.slane %v1184, 4
        %v1186 = vadd.f32 %v1184, %v1185
        %v1187 = vrot.slane %v1186, 2
        %v1188 = vadd.f32 %v1186, %v1187
        %v1189 = vrot.slane %v1188, 1
        %v1190 = vadd.f32 %v1188, %v1189
        %v1191 = vsel %vm703, %v1190, 1.0
        %v1192 = vrcp.pop %v1191
        %v1193 = vmul.f32 %v1191, %v1192
        %v1194 = vsub.f32 2.0, %v1193
        %v1195 = vmul.f32 %v1192, %v1194
        %v1196 = vsel %vm703, %v1195, 0.0
        %v1197 = vmul.f32 %v713, %v1196
        %1198 = vadd.xlane.f32.xlu0 %v1197
        %v1199 = vpop.xlane.xlu0 %1198
        %v1200 = vsel %vm702, %v1199, 1.0
        %v1201 = vrcp.pop %v1200
        %v1202 = vmul.f32 %v1200, %v1201
        %v1203 = vsub.f32 2.0, %v1202
        %v1204 = vmul.f32 %v1201, %v1203
        %v1205 = vsel %vm702, %v1204, 0.0
        %v1206 = vmul.f32 %v713, %v1205
        %v1207 = vrot.slane %v1206, 4
        %v1208 = vadd.f32 %v1206, %v1207
        %v1209 = vrot.slane %v1208, 2
        %v1210 = vadd.f32 %v1208, %v1209
        %v1211 = vrot.slane %v1210, 1
        %v1212 = vadd.f32 %v1210, %v1211
        %v1213 = vsel %vm703, %v1212, 1.0
        %v1214 = vrcp.pop %v1213
        %v1215 = vmul.f32 %v1213, %v1214
        %v1216 = vsub.f32 2.0, %v1215
        %v1217 = vmul.f32 %v1214, %v1216
        %v1218 = vsel %vm703, %v1217, 0.0
        %v1219 = vmul.f32 %v713, %v1218
        %1220 = vadd.xlane.f32.xlu0 %v1219
        %v1221 = vpop.xlane.xlu0 %1220
        %v1222 = vsel %vm702, %v1221, 1.0
        %v1223 = vrcp.pop %v1222
        %v1224 = vmul.f32 %v1222, %v1223
        %v1225 = vsub.f32 2.0, %v1224
        %v1226 = vmul.f32 %v1223, %v1225
        %v1227 = vsel %vm702, %v1226, 0.0
        %v1228 = vmul.f32 %v713, %v1227
        %v1229 = vrot.slane %v1228, 4
        %v1230 = vadd.f32 %v1228, %v1229
        %v1231 = vrot.slane %v1230, 2
        %v1232 = vadd.f32 %v1230, %v1231
        %v1233 = vrot.slane %v1232, 1
        %v1234 = vadd.f32 %v1232, %v1233
        %v1235 = vsel %vm703, %v1234, 1.0
        %v1236 = vrcp.pop %v1235
        %v1237 = vmul.f32 %v1235, %v1236
        %v1238 = vsub.f32 2.0, %v1237
        %v1239 = vmul.f32 %v1236, %v1238
        %v1240 = vsel %vm703, %v1239, 0.0
        %v1241 = vmul.f32 %v713, %v1240
        %1242 = vadd.xlane.f32.xlu0 %v1241
        %v1243 = vpop.xlane.xlu0 %1242
        %v1244 = vsel %vm702, %v1243, 1.0
        %v1245 = vrcp.pop %v1244
        %v1246 = vmul.f32 %v1244, %v1245
        %v1247 = vsub.f32 2.0, %v1246
        %v1248 = vmul.f32 %v1245, %v1247
        %v1249 = vsel %vm702, %v1248, 0.0
        %v1250 = vmul.f32 %v713, %v1249
        %v1251 = vrot.slane %v1250, 4
        %v1252 = vadd.f32 %v1250, %v1251
        %v1253 = vrot.slane %v1252, 2
        %v1254 = vadd.f32 %v1252, %v1253
        %v1255 = vrot.slane %v1254, 1
        %v1256 = vadd.f32 %v1254, %v1255
        %v1257 = vsel %vm703, %v1256, 1.0
        %v1258 = vrcp.pop %v1257
        %v1259 = vmul.f32 %v1257, %v1258
        %v1260 = vsub.f32 2.0, %v1259
        %v1261 = vmul.f32 %v1258, %v1260
        %v1262 = vsel %vm703, %v1261, 0.0
        %v1263 = vmul.f32 %v713, %v1262
        %1264 = vadd.xlane.f32.xlu0 %v1263
        %v1265 = vpop.xlane.xlu0 %1264
        %v1266 = vsel %vm702, %v1265, 1.0
        %v1267 = vrcp.pop %v1266
        %v1268 = vmul.f32 %v1266, %v1267
        %v1269 = vsub.f32 2.0, %v1268
        %v1270 = vmul.f32 %v1267, %v1269
        %v1271 = vsel %vm702, %v1270, 0.0
        %v1272 = vmul.f32 %v713, %v1271
        %v1273 = vrot.slane %v1272, 4
        %v1274 = vadd.f32 %v1272, %v1273
        %v1275 = vrot.slane %v1274, 2
        %v1276 = vadd.f32 %v1274, %v1275
        %v1277 = vrot.slane %v1276, 1
        %v1278 = vadd.f32 %v1276, %v1277
        %v1279 = vsel %vm703, %v1278, 1.0
        %v1280 = vrcp.pop %v1279
        %v1281 = vmul.f32 %v1279, %v1280
        %v1282 = vsub.f32 2.0, %v1281
        %v1283 = vmul.f32 %v1280, %v1282
        %v1284 = vsel %vm703, %v1283, 0.0
        %v1285 = vmul.f32 %v713, %v1284
        %1286 = vadd.xlane.f32.xlu0 %v1285
        %v1287 = vpop.xlane.xlu0 %1286
        %v1288 = vsel %vm702, %v1287, 1.0
        %v1289 = vrcp.pop %v1288
        %v1290 = vmul.f32 %v1288, %v1289
        %v1291 = vsub.f32 2.0, %v1290
        %v1292 = vmul.f32 %v1289, %v1291
        %v1293 = vsel %vm702, %v1292, 0.0
        %v1294 = vmul.f32 %v713, %v1293
        %v1295 = vrot.slane %v1294, 4
        %v1296 = vadd.f32 %v1294, %v1295
        %v1297 = vrot.slane %v1296, 2
        %v1298 = vadd.f32 %v1296, %v1297
        %v1299 = vrot.slane %v1298, 1
        %v1300 = vadd.f32 %v1298, %v1299
        %v1301 = vsel %vm703, %v1300, 1.0
        %v1302 = vrcp.pop %v1301
        %v1303 = vmul.f32 %v1301, %v1302
        %v1304 = vsub.f32 2.0, %v1303
        %v1305 = vmul.f32 %v1302, %v1304
        %v1306 = vsel %vm703, %v1305, 0.0
        %v1307 = vmul.f32 %v713, %v1306
        %1308 = vadd.xlane.f32.xlu0 %v1307
        %v1309 = vpop.xlane.xlu0 %1308
        %v1310 = vsel %vm702, %v1309, 1.0
        %v1311 = vrcp.pop %v1310
        %v1312 = vmul.f32 %v1310, %v1311
        %v1313 = vsub.f32 2.0, %v1312
        %v1314 = vmul.f32 %v1311, %v1313
        %v1315 = vsel %vm702, %v1314, 0.0
        %v1316 = vmul.f32 %v713, %v1315
        %v1317 = vrot.slane %v1316, 4
        %v1318 = vadd.f32 %v1316, %v1317
        %v1319 = vrot.slane %v1318, 2
        %v1320 = vadd.f32 %v1318, %v1319
        %v1321 = vrot.slane %v1320, 1
        %v1322 = vadd.f32 %v1320, %v1321
        %v1323 = vsel %vm703, %v1322, 1.0
        %v1324 = vrcp.pop %v1323
        %v1325 = vmul.f32 %v1323, %v1324
        %v1326 = vsub.f32 2.0, %v1325
        %v1327 = vmul.f32 %v1324, %v1326
        %v1328 = vsel %vm703, %v1327, 0.0
        %v1329 = vmul.f32 %v713, %v1328
        %1330 = vadd.xlane.f32.xlu0 %v1329
        %v1331 = vpop.xlane.xlu0 %1330
        %v1332 = vsel %vm702, %v1331, 1.0
        %v1333 = vrcp.pop %v1332
        %v1334 = vmul.f32 %v1332, %v1333
        %v1335 = vsub.f32 2.0, %v1334
        %v1336 = vmul.f32 %v1333, %v1335
        %v1337 = vsel %vm702, %v1336, 0.0
        %v1338 = vmul.f32 %v713, %v1337
        %v1339 = vrot.slane %v1338, 4
        %v1340 = vadd.f32 %v1338, %v1339
        %v1341 = vrot.slane %v1340, 2
        %v1342 = vadd.f32 %v1340, %v1341
        %v1343 = vrot.slane %v1342, 1
        %v1344 = vadd.f32 %v1342, %v1343
        %v1345 = vsel %vm703, %v1344, 1.0
        %v1346 = vrcp.pop %v1345
        %v1347 = vmul.f32 %v1345, %v1346
        %v1348 = vsub.f32 2.0, %v1347
        %v1349 = vmul.f32 %v1346, %v1348
        %v1350 = vsel %vm703, %v1349, 0.0
        %v1351 = vmul.f32 %v713, %v1350
        %1352 = vadd.xlane.f32.xlu0 %v1351
        %v1353 = vpop.xlane.xlu0 %1352
        %v1354 = vsel %vm702, %v1353, 1.0
        %v1355 = vrcp.pop %v1354
        %v1356 = vmul.f32 %v1354, %v1355
        %v1357 = vsub.f32 2.0, %v1356
        %v1358 = vmul.f32 %v1355, %v1357
        %v1359 = vsel %vm702, %v1358, 0.0
        %v1360 = vmul.f32 %v713, %v1359
        %v1361 = vrot.slane %v1360, 4
        %v1362 = vadd.f32 %v1360, %v1361
        %v1363 = vrot.slane %v1362, 2
        %v1364 = vadd.f32 %v1362, %v1363
        %v1365 = vrot.slane %v1364, 1
        %v1366 = vadd.f32 %v1364, %v1365
        %v1367 = vsel %vm703, %v1366, 1.0
        %v1368 = vrcp.pop %v1367
        %v1369 = vmul.f32 %v1367, %v1368
        %v1370 = vsub.f32 2.0, %v1369
        %v1371 = vmul.f32 %v1368, %v1370
        %v1372 = vsel %vm703, %v1371, 0.0
        %v1373 = vmul.f32 %v1360, %v1372
        %1374 = vst [vmem:[%s202] sm:$0xff] %v1373
        %s1375 = sand.u32 %s98, 1
        %s1376 = scalar_lea.sflag [#allocation5], %s1375
        %s1377 = sand.u32 %s98, 1
        %s1378 = smul.addr %s1377, 8
        %s1379 = scalar_lea.vmem [#allocation8], %s1378
        // Predicated region
        $region41: #{tpu_custom_call.1} parent=31 // pred_check
          %p1380 = pneg %p108
        $region42: #{tpu_custom_call.1} parent=31 // pred_check_branch
          %1382 = sbr.rel (%p1380) target = $region44
        $region43: #{tpu_custom_call.1} parent=31 // pred_region
          %s1384 = ssub.s32 128, 128
          %1385 = vsyncadd %s1376, %s1384
          %s1386 = smul.addr %s22, 128
          %s1387 = scalar_lea.hbm %s3, %s1386
          %s1389 = sshll.u32 %s1379, 4
          %s1390 = int_to_ptr.vmem [resolvable:$true] %s1389
          %1392 = dma.vmem_to_hbm [thread:$0]  %s1390, 128, %s1387, %s1376
        $region44: #{tpu_custom_call.1} parent=31 // pred_fallthru
          _
      $region32: #{tpu_custom_call.1} parent=5 // pred_fallthru
        _
      %p1393 = scmp.le.s32.totalorder 2, %s17
      // Predicated region
      $region45: #{tpu_custom_call.1} parent=5 // pred_check
        %p1394 = pneg %p1393
      $region46: #{tpu_custom_call.1} parent=5 // pred_check_branch
        %1396 = sbr.rel (%p1394) target = $region48
      $region47: #{tpu_custom_call.1} parent=5 // pred_region
        %s1397 = ssub.s32 %s17, 2
        // Predicated region
        $region49: #{tpu_custom_call.1} parent=47 // pred_check
          %p1398 = pneg %p114
        $region50: #{tpu_custom_call.1} parent=47 // pred_check_branch
          %1400 = sbr.rel (%p1398) target = $region52
        $region51: #{tpu_custom_call.1} parent=47 // pred_region
          %s1401 = sand.u32 %s99, 1
          %s1402 = scalar_lea.sflag [#allocation5], %s1401
          %s1403 = sand.u32 %s99, 1
          %s1404 = smul.addr %s1403, 8
          %s1405 = scalar_lea.vmem [#allocation8], %s1404
          %1406 = dma.done %s1402, 128
        $region52: #{tpu_custom_call.1} parent=47 // pred_fallthru
          _
      $region48: #{tpu_custom_call.1} parent=5 // pred_fallthru
        _
    $region6: #{tpu_custom_call.1} parent=1 // loop_footer
      %s21 = sadd.s32 1, %s17
    $region7: #{tpu_custom_call.1} parent=1 // loop_footer_branch
      %16 = sbr.rel target = $region3
    $region8: #{tpu_custom_call.1} parent=1 // loop_exit
      _
    %1407 = vsyncpa [#allocation4], 1
    %s1408 = scalar_lea.sflag [#allocation4], 1
    %1409 = vsyncpa %s1408, 1
    %1410 = vsyncpa [#allocation7], 1
    %s1411 = scalar_lea.sflag [#allocation7], 1
    %1412 = vsyncpa %s1411, 1
    %1413 = vsyncpa [#allocation5], 1
    %s1414 = scalar_lea.sflag [#allocation5], 1
    %1415 = vsyncpa %s1414, 1

</llo_original>
